<compile_context>
chip_gen: v7x
topology: tpu7x:2x2x1
jax: 0.10.0
libtpu: 0.0.40
codegen_flags: <defaults>
</compile_context>

<pallas_src>
import math

import jax
import jax.numpy as jnp
import numpy as np
from jax.experimental import pallas as pl
from jax.experimental.pallas import tpu as pltpu


def _vmem_limit_bytes():
    # v7x has 64 MiB/TC -> leave headroom for Mosaic internal scratch;
    # v5e/v6e have 128 MiB -> allow larger tiles.
    try:
        cap = int(pltpu.get_tpu_info().vmem_capacity_bytes)
    except Exception:
        cap = 128 * 1024 * 1024
    if cap <= 64 * 1024 * 1024:
        return 48 * 1024 * 1024
    return 100 * 1024 * 1024


# ----------------------------------------------------------------------------
# Kernel 1: (tok+pos) -> fused projection -> chunkwise stabilized mLSTM -> LN
# ----------------------------------------------------------------------------
def _mlstm_ln_chunk_kernel(tok_ref, pos_ref, w_ref, b_ref, causal_ref, eye_ref,
                           gamma_ref, beta_ref, o_ref, c_state, n_state, m_state):
    # tok_ref/pos_ref : (L, D) f32   one time-chunk of one batch row
    # w_ref : (D, 4D+128) compute dtype, b_ref : (1, 4D+128) f32
    # causal_ref/eye_ref : (L, L) f32 hoisted constants
    # gamma_ref/beta_ref : (1, D) f32 (final LayerNorm params, fused epilogue)
    # c_state : (D, D) f32, n_state : (1, D) f32, m_state : (1, 1) f32 (chunk carry)
    L, d = tok_ref.shape
    cdt = w_ref.dtype

    # Reset the recurrent state at the first time-chunk of every batch row.
    @pl.when(pl.program_id(1) == 0)
    def _():
        c_state[...] = jnp.zeros_like(c_state)
        n_state[...] = jnp.zeros_like(n_state)
        m_state[...] = jnp.zeros_like(m_state)

    # Fused embedding add + all projections ([q|k|v|o] + 128-lane gate block).
    x = tok_ref[...] + pos_ref[...]
    proj = jnp.dot(x.astype(cdt), w_ref[...],
                   preferred_element_type=jnp.float32) + b_ref[...]

    q = proj[:, 0:d]                                    # (L, D)
    k = proj[:, d:2 * d] * (1.0 / math.sqrt(d))         # (L, D)
    v = proj[:, 2 * d:3 * d]                            # (L, D)
    og = jax.nn.sigmoid(proj[:, 3 * d:4 * d])           # (L, D) output gate
    a_i = proj[:, 4 * d:4 * d + 1]                      # (L, 1) input-gate preact
    a_f = proj[:, 4 * d + 1:4 * d + 2]                  # (L, 1) forget-gate preact

    causal = causal_ref[...]                            # (L, L) {0,1}, row>=col
    neg = jnp.float32(-1e30)

    # Stable log-sigmoid (no log(sigmoid(.)) -inf underflow).
    log_f = jnp.minimum(a_f, 0.0) - jnp.log(1.0 + jnp.exp(-jnp.abs(a_f)))   # (L,1)
    # Inclusive cumulative log-forget via a tiny (L,L)x(L,1) MXU matmul.
    logb = jnp.dot(causal, log_f, preferred_element_type=jnp.float32)       # (L,1)
    g_col = a_i - logb                                                      # (L,1)
    # Row-oriented copy of g via a tiny (1,L)x(L,L) MXU contraction with the
    # hoisted identity (replaces the old O(L^3) ones@diag broadcast).
    g_row = jnp.dot(jnp.ones((1, L), jnp.float32), eye_ref[...] * g_col,
                    preferred_element_type=jnp.float32)                     # (1,L)

    # Max stabilizer: m_t = logb_t + M_t,  M_t = max(m_prev, max_{j<=t} g_j).
    m_prev = m_state[...]                                                   # (1,1)
    m_col = jnp.maximum(
        jnp.max(jnp.where(causal > 0.5, g_row, neg), axis=1, keepdims=True),
        m_prev)                                                             # (L,1)
    # Decay-mask; all exponents <= 0 so the mask lies in (0, 1].
    gate = jnp.exp(jnp.where(causal > 0.5, g_row - m_col, neg))             # (L,L)

    # Intra-chunk contribution: attention-style bf16 MXU matmuls, f32 accumulate.
    s = jax.lax.dot_general(q.astype(cdt), k.astype(cdt),
                            (((1,), (1,)), ((), ())),
                            preferred_element_type=jnp.float32)             # (L,L)
    sg = s * gate
    intra = jnp.dot(sg.astype(cdt), v.astype(cdt),
                    preferred_element_type=jnp.float32)                     # (L,D)

    # Inter-chunk contribution from the carried (stabilized) state.
    inter_scale = jnp.exp(m_prev - m_col)                                   # (L,1)
    inter = inter_scale * jnp.dot(q.astype(cdt), c_state[...].astype(cdt),
                                  preferred_element_type=jnp.float32)       # (L,D)
    num = inter + intra

    dvec = (inter_scale * jnp.sum(q * n_state[...], axis=1, keepdims=True)
            + jnp.sum(sg, axis=1, keepdims=True))                           # (L,1)
    den = jnp.maximum(jnp.abs(dvec), jnp.exp(-(logb + m_col)))
    h = og * num * pl.reciprocal(den, approx=True)                          # (L,D)

    # Fused final LayerNorm (ln_f) epilogue; store activations in compute dtype.
    mu = jnp.mean(h, axis=-1, keepdims=True)
    var = jnp.mean(jnp.square(h - mu), axis=-1, keepdims=True)
    y = (h - mu) * jax.lax.rsqrt(var + 1e-5) * gamma_ref[...] + beta_ref[...]
    o_ref[...] = y.astype(o_ref.dtype)

    # Chunk-boundary carry (stabilized, all exponents <= 0); f32 carry,
    # bf16 matmul operands.
    m_last = m_col[L - 1:L, :]                                              # (1,1)
    cscale = jnp.exp(m_prev - m_last)                                       # (1,1)
    k_scaled = jnp.exp(g_col - m_last) * k                                  # (L,D)
    c_state[...] = cscale * c_state[...] + jax.lax.dot_general(
        k_scaled.astype(cdt), v.astype(cdt), (((0,), (0,)), ((), ())),
        preferred_element_type=jnp.float32)
    n_state[...] = cscale * n_state[...] + jnp.sum(k_scaled, axis=0, keepdims=True)
    m_state[...] = logb[L - 1:L, :] + m_last


def _pick_chunk(T, chunk_len):
    if chunk_len is not None:
        return chunk_len if T % chunk_len == 0 else T
    for c in (128, 64, 32, 16, 8):   # default L=128; pass chunk_len=256 on v6e/v7x
        if T % c == 0:
            return c
    return T


def mlstm_ln_forward(tok_emb, pos_emb, w, b, ln_g, ln_b, *,
                     compute_dtype=jnp.bfloat16, chunk_len=None):
    B, T, d = tok_emb.shape
    L = _pick_chunk(T, chunk_len)
    nc = T // L

    # Re-layout the fused projection: [q|k|v|o] (4D cols) + a 128-lane padded
    # gate block holding the i/f pre-activations (lane-aligned slices).
    gate_pad = 128
    w_fused = jnp.concatenate(
        [w[:, :4 * d], jnp.pad(w[:, 4 * d:], ((0, 0), (0, gate_pad - 2)))], axis=1)
    b_fused = jnp.concatenate(
        [b[:, :4 * d], jnp.pad(b[:, 4 * d:], ((0, 0), (0, gate_pad - 2)))], axis=1)
    P = 4 * d + gate_pad
    w_fused = w_fused.astype(compute_dtype)   # halve weight DMA bytes

    # Hoisted loop-invariant (L,L) constants (no per-grid-step iota/mask rebuild).
    r = jnp.arange(L)
    causal = (r[:, None] >= r[None, :]).astype(jnp.float32)
    eye = jnp.eye(L, dtype=jnp.float32)

    return pl.pallas_call(
        _mlstm_ln_chunk_kernel,
        out_shape=jax.ShapeDtypeStruct((B, T, d), compute_dtype),
        grid=(B, nc),                    # B >= 2 keeps both v7x TCs busy
        in_specs=[
            pl.BlockSpec((None, L, d), lambda bi, ci: (bi, ci, 0)),   # tok chunk
            pl.BlockSpec((L, d), lambda bi, ci: (ci, 0)),             # pos chunk
            pl.BlockSpec((d, P), lambda bi, ci: (0, 0)),              # fused W
            pl.BlockSpec((1, P), lambda bi, ci: (0, 0)),              # fused b
            pl.BlockSpec((L, L), lambda bi, ci: (0, 0)),              # causal mask
            pl.BlockSpec((L, L), lambda bi, ci: (0, 0)),              # identity
            pl.BlockSpec((1, d), lambda bi, ci: (0, 0)),              # ln gamma
            pl.BlockSpec((1, d), lambda bi, ci: (0, 0)),              # ln beta
        ],
        out_specs=pl.BlockSpec((None, L, d), lambda bi, ci: (bi, ci, 0)),
        scratch_shapes=[
            pltpu.VMEM((d, d), jnp.float32),   # C matrix memory (chunk carry)
            pltpu.VMEM((1, d), jnp.float32),   # normalizer n (chunk carry)
            pltpu.VMEM((1, 1), jnp.float32),   # max-stabilizer m (chunk carry)
        ],
        compiler_params=pltpu.CompilerParams(
            dimension_semantics=("parallel", "arbitrary"),
            vmem_limit_bytes=_vmem_limit_bytes(),
        ),
    )(tok_emb, pos_emb, w_fused, b_fused, causal, eye, ln_g, ln_b)


# ----------------------------------------------------------------------------
# Kernel 2: tiled head matmul + bias -> logits (lane-dense, vocab padded to 128)
# ----------------------------------------------------------------------------
def _head_kernel(x_ref, w_ref, b_ref, o_ref):
    o_ref[...] = (jnp.dot(x_ref[...], w_ref[...],
                          preferred_element_type=jnp.float32)
                  + b_ref[...]).astype(o_ref.dtype)


def _pick_tile(n, candidates):
    for c in candidates:
        if n % c == 0:
            return c
    return n


def head_forward(x2d, w_head, b_head, *, compute_dtype=jnp.bfloat16):
    N, d = x2d.shape
    V = w_head.shape[1]
    v_pad = ((V + 127) // 128) * 128          # lane-dense output (unmasked stores)
    if v_pad != V:
        w_head = jnp.pad(w_head, ((0, 0), (0, v_pad - V)))
        b_head = jnp.pad(b_head, ((0, 0), (0, v_pad - V)))
    w_head = w_head.astype(compute_dtype)
    tn = _pick_tile(N, (512, 256, 128, 64, 32, 16, 8))
    tv = _pick_tile(v_pad, (1024, 512, 256, 128))
    out = pl.pallas_call(
        _head_kernel,
        out_shape=jax.ShapeDtypeStruct((N, v_pad), jnp.float32),
        grid=(N // tn, v_pad // tv),
        in_specs=[
            pl.BlockSpec((tn, d), lambda i, j: (i, 0)),
            pl.BlockSpec((d, tv), lambda i, j: (0, j)),
            pl.BlockSpec((1, tv), lambda i, j: (0, j)),
        ],
        out_specs=pl.BlockSpec((tn, tv), lambda i, j: (i, j)),
        compiler_params=pltpu.CompilerParams(
            dimension_semantics=("parallel", "parallel"),
            vmem_limit_bytes=_vmem_limit_bytes(),
        ),
    )(x2d, w_head, b_head)
    return out[:, :V]


# ----------------------------------------------------------------------------
# Full forward (glue: embedding gathers + reshapes in plain JAX)
# ----------------------------------------------------------------------------
def xlstm_lm_forward(idx, params, targets=None, *,
                     compute_dtype=jnp.bfloat16, chunk_len=None):
    B, T = idx.shape
    tok_emb = params["tok_emb"][idx]          # (B, T, D) gather (plain JAX)
    pos_emb = params["pos_emb"][:T]           # (T, D)
    h = mlstm_ln_forward(tok_emb, pos_emb, params["W_mlstm"], params["b_mlstm"],
                         params["ln_g"], params["ln_b"],
                         compute_dtype=compute_dtype, chunk_len=chunk_len)
    d = h.shape[-1]
    logits2d = head_forward(h.reshape(B * T, d), params["W_head"],
                            params["b_head"], compute_dtype=compute_dtype)
    V = logits2d.shape[-1]
    logits = logits2d.reshape(B, T, V)
    if targets is None:
        loss = None
    else:
        logp = jax.nn.log_softmax(logits2d.astype(jnp.float32), axis=-1)
        loss = -jnp.mean(jnp.take_along_axis(logp, targets.reshape(-1, 1), axis=-1))
    return logits, loss


# ----------------------------------------------------------------------------
# Pure-JAX sequential reference (semantics anchor, float32 end-to-end)
# ----------------------------------------------------------------------------
def _forward_ref(idx, params):
    B, T = idx.shape
    tok = params["tok_emb"][idx]
    pos = params["pos_emb"][:T]
    x = tok + pos[None]
    W, b = params["W_mlstm"], params["b_mlstm"]
    d = x.shape[-1]
    proj = jnp.einsum("btd,dp->btp", x, W) + b.reshape(1, 1, -1)
    q = proj[..., :d]
    k = proj[..., d:2 * d] / jnp.sqrt(jnp.float32(d))
    v = proj[..., 2 * d:3 * d]
    o = jax.nn.sigmoid(proj[..., 3 * d:4 * d])
    ig = jnp.exp(proj[..., 4 * d:4 * d + 1])
    fg = jax.nn.sigmoid(proj[..., 4 * d + 1:4 * d + 2])

    def step(carry, t):
        C, n = carry
        kt, vt, qt = k[:, t], v[:, t], q[:, t]
        it, ft = ig[:, t], fg[:, t]
        C = ft[..., None] * C + it[..., None] * (kt[:, :, None] * vt[:, None, :])
        n = ft * n + it * kt
        num = jnp.einsum("bd,bde->be", qt, C)
        den = jnp.maximum(jnp.abs(jnp.sum(n * qt, -1, keepdims=True)), 1.0)
        return (C, n), o[:, t] * num / den

    (_, _), hs = jax.lax.scan(
        step, (jnp.zeros((B, d, d)), jnp.zeros((B, d))), jnp.arange(T))
    h = jnp.transpose(hs, (1, 0, 2))
    mu = h.mean(-1, keepdims=True)
    var = ((h - mu) ** 2).mean(-1, keepdims=True)
    y = (h - mu) / jnp.sqrt(var + 1e-5) * params["ln_g"] + params["ln_b"]
    return y @ params["W_head"] + params["b_head"]


if __name__ == "__main__":
    key = jax.random.PRNGKey(0)
    B, T, D, V = 2, 16, 32, 65   # batch, block_size (seq), n_embd, vocab_size
    keys = jax.random.split(key, 8)

    params = {
        "tok_emb": 0.02 * jax.random.normal(keys[0], (V, D), jnp.float32),
        "pos_emb": 0.02 * jax.random.normal(keys[1], (T, D), jnp.float32),
        # fused mLSTM projection: [q | k | v | o | i | f] -> (D, 4D+2)
        "W_mlstm": 0.2 * jax.random.normal(keys[2], (D, 4 * D + 2), jnp.float32),
        "b_mlstm": jnp.zeros((1, 4 * D + 2), jnp.float32),
        "ln_g": 1.0 + 0.1 * jax.random.normal(keys[3], (1, D), jnp.float32),
        "ln_b": 0.1 * jax.random.normal(keys[4], (1, D), jnp.float32),
        "W_head": 0.1 * jax.random.normal(keys[5], (D, V), jnp.float32),
        "b_head": 0.05 * jax.random.normal(keys[6], (1, V), jnp.float32),
    }
    idx = jax.random.randint(keys[7], (B, T), 0, V, dtype=jnp.int32)

    ref = np.asarray(_forward_ref(idx, params))

    # (1) f32 matmul path with 2 time-chunks per row: tight check that the
    #     stabilized chunkwise-parallel reformulation matches the sequential
    #     recurrence (chunk-boundary state carry is exercised).
    logits_f32, loss = xlstm_lm_forward(idx, params,
                                        compute_dtype=jnp.float32, chunk_len=8)
    jax.block_until_ready(logits_f32)
    assert logits_f32.shape == (B, T, V) and loss is None
    np.testing.assert_allclose(np.asarray(logits_f32), ref, rtol=1e-2, atol=1e-2)

    # (2) production default: bf16 MXU matmuls (recurrent state / LayerNorm
    #     stats in f32).  Loose sanity bound vs. the pure-f32 reference — only
    #     mixed-precision drift is expected; algorithmic errors would be O(1).
    logits_bf16, _ = xlstm_lm_forward(idx, params)
    jax.block_until_ready(logits_bf16)
    np.testing.assert_allclose(np.asarray(logits_bf16), ref, rtol=5e-2, atol=2e-1)

    print("KERNEL_OK")
</pallas_src>

<mosaic_0001>
module attributes {stable_mosaic.version = 11 : i64} {
  func.func @_mlstm_ln_chunk_kernel(%arg0: i32, %arg1: i32, %arg2: memref<1x8x32xf32, #tpu.memory_space<vmem>>, %arg3: memref<8x32xf32, #tpu.memory_space<vmem>>, %arg4: memref<32x256xf32, #tpu.memory_space<vmem>>, %arg5: memref<1x256xf32, #tpu.memory_space<vmem>>, %arg6: memref<8x8xf32, #tpu.memory_space<vmem>>, %arg7: memref<8x8xf32, #tpu.memory_space<vmem>>, %arg8: memref<1x32xf32, #tpu.memory_space<vmem>>, %arg9: memref<1x32xf32, #tpu.memory_space<vmem>>, %arg10: memref<1x8x32xf32, #tpu.memory_space<vmem>>, %arg11: memref<32x32xf32, #tpu.memory_space<vmem>>, %arg12: memref<1x32xf32, #tpu.memory_space<vmem>>, %arg13: memref<1x1xf32, #tpu.memory_space<vmem>>) attributes {dimension_semantics = [#tpu.dimension_semantics<parallel>, #tpu.dimension_semantics<arbitrary>], iteration_bounds = array<i64: 2, 2>, scalar_prefetch = 0 : i64, scratch_operands = 3 : i64, tpu.core_type = #tpu.core_type<tc>, window_params = [{transform_indices = @transform_0, window_bounds = array<i64: 1, 8, 32>}, {transform_indices = @transform_1, window_bounds = array<i64: 8, 32>}, {pipeline_mode = #tpu.pipeline_mode<synchronous>, transform_indices = @transform_2, window_bounds = array<i64: 32, 256>}, {pipeline_mode = #tpu.pipeline_mode<synchronous>, transform_indices = @transform_3, window_bounds = array<i64: 1, 256>}, {pipeline_mode = #tpu.pipeline_mode<synchronous>, transform_indices = @transform_4, window_bounds = array<i64: 8, 8>}, {pipeline_mode = #tpu.pipeline_mode<synchronous>, transform_indices = @transform_5, window_bounds = array<i64: 8, 8>}, {pipeline_mode = #tpu.pipeline_mode<synchronous>, transform_indices = @transform_6, window_bounds = array<i64: 1, 32>}, {pipeline_mode = #tpu.pipeline_mode<synchronous>, transform_indices = @transform_7, window_bounds = array<i64: 1, 32>}, {transform_indices = @transform_8, window_bounds = array<i64: 1, 8, 32>}]} {
    %c0_i32 = arith.constant 0 : i32
    %0 = arith.cmpi eq, %arg1, %c0_i32 : i32
    %1 = arith.extui %0 : i1 to i32
    %c0_i32_0 = arith.constant 0 : i32
    %2 = arith.cmpi ne, %1, %c0_i32_0 : i32
    scf.if %2 {
      %cst_62 = arith.constant 0.000000e+00 : f32
      %143 = vector.broadcast %cst_62 : f32 to vector<32x32xf32>
      %c0_63 = arith.constant 0 : index
      %c0_64 = arith.constant 0 : index
      %144 = vector.load %arg11[%c0_63, %c0_64] : memref<32x32xf32, #tpu.memory_space<vmem>>, vector<32x32xf32>
      tpu.vector_store %arg11[%c0_63, %c0_64], %143 {strides = array<i32>} : memref<32x32xf32, #tpu.memory_space<vmem>>, vector<32x32xf32>,
      %cst_65 = arith.constant 0.000000e+00 : f32
      %145 = vector.broadcast %cst_65 : f32 to vector<1x32xf32>
      %c0_66 = arith.constant 0 : index
      %c0_67 = arith.constant 0 : index
      %146 = vector.load %arg12[%c0_66, %c0_67] : memref<1x32xf32, #tpu.memory_space<vmem>>, vector<1x32xf32>
      tpu.vector_store %arg12[%c0_66, %c0_67], %145 {strides = array<i32>} : memref<1x32xf32, #tpu.memory_space<vmem>>, vector<1x32xf32>,
      %cst_68 = arith.constant 0.000000e+00 : f32
      %147 = vector.broadcast %cst_68 : f32 to vector<1x1xf32>
      %c0_69 = arith.constant 0 : index
      %c0_70 = arith.constant 0 : index
      %148 = vector.load %arg13[%c0_69, %c0_70] : memref<1x1xf32, #tpu.memory_space<vmem>>, vector<1x1xf32>
      tpu.vector_store %arg13[%c0_69, %c0_70], %147 {strides = array<i32>} : memref<1x1xf32, #tpu.memory_space<vmem>>, vector<1x1xf32>,
    } else {
    }
    %c0 = arith.constant 0 : index
    %c0_1 = arith.constant 0 : index
    %c0_2 = arith.constant 0 : index
    %3 = vector.load %arg2[%c0, %c0_1, %c0_2] : memref<1x8x32xf32, #tpu.memory_space<vmem>>, vector<1x8x32xf32>
    %4 = vector.shape_cast %3 : vector<1x8x32xf32> to vector<8x32xf32>
    %c0_3 = arith.constant 0 : index
    %c0_4 = arith.constant 0 : index
    %5 = vector.load %arg3[%c0_3, %c0_4] : memref<8x32xf32, #tpu.memory_space<vmem>>, vector<8x32xf32>
    %6 = arith.addf %4, %5 : vector<8x32xf32>
    %c0_5 = arith.constant 0 : index
    %c0_6 = arith.constant 0 : index
    %7 = vector.load %arg4[%c0_5, %c0_6] : memref<32x256xf32, #tpu.memory_space<vmem>>, vector<32x256xf32>
    %cst = arith.constant dense<0.000000e+00> : vector<8x256xf32>
    %8 = tpu.matmul %6, %7, %cst {dimension_numbers = #tpu.dot_dimension_numbers<[1], [0], [0], [1], [0, 0, 1, 1], [], []>} : vector<8x32xf32>, vector<32x256xf32>, vector<8x256xf32> -> vector<8x256xf32>
    %c0_7 = arith.constant 0 : index
    %c0_8 = arith.constant 0 : index
    %9 = vector.load %arg5[%c0_7, %c0_8] : memref<1x256xf32, #tpu.memory_space<vmem>>, vector<1x256xf32>
    %10 = vector.broadcast %9 : vector<1x256xf32> to vector<8x256xf32>
    %11 = arith.addf %8, %10 : vector<8x256xf32>
    %12 = vector.extract_strided_slice %11 {offsets = [0, 0], sizes = [8, 32], strides = [1, 1]} : vector<8x256xf32> to vector<8x32xf32>
    %13 = vector.extract_strided_slice %11 {offsets = [0, 32], sizes = [8, 32], strides = [1, 1]} : vector<8x256xf32> to vector<8x32xf32>
    %cst_9 = arith.constant 0.176776692 : f32
    %14 = vector.broadcast %cst_9 : f32 to vector<8x32xf32>
    %15 = arith.mulf %13, %14 : vector<8x32xf32>
    %16 = vector.extract_strided_slice %11 {offsets = [0, 64], sizes = [8, 32], strides = [1, 1]} : vector<8x256xf32> to vector<8x32xf32>
    %17 = vector.extract_strided_slice %11 {offsets = [0, 96], sizes = [8, 32], strides = [1, 1]} : vector<8x256xf32> to vector<8x32xf32>
    %18 = arith.negf %17 : vector<8x32xf32>
    %19 = math.exp %18 : vector<8x32xf32>
    %cst_10 = arith.constant 1.000000e+00 : f32
    %20 = vector.broadcast %cst_10 : f32 to vector<8x32xf32>
    %21 = arith.addf %20, %19 : vector<8x32xf32>
    %22 = arith.divf %20, %21 : vector<8x32xf32>
    %23 = vector.extract_strided_slice %11 {offsets = [0, 128], sizes = [8, 1], strides = [1, 1]} : vector<8x256xf32> to vector<8x1xf32>
    %24 = vector.extract_strided_slice %11 {offsets = [0, 129], sizes = [8, 1], strides = [1, 1]} : vector<8x256xf32> to vector<8x1xf32>
    %c0_11 = arith.constant 0 : index
    %c0_12 = arith.constant 0 : index
    %25 = vector.load %arg6[%c0_11, %c0_12] : memref<8x8xf32, #tpu.memory_space<vmem>>, vector<8x8xf32>
    %cst_13 = arith.constant 0.000000e+00 : f32
    %26 = vector.broadcast %cst_13 : f32 to vector<8x1xf32>
    %27 = arith.minimumf %24, %26 : vector<8x1xf32>
    %28 = math.absf %24 : vector<8x1xf32>
    %cst_14 = arith.constant 0.000000e+00 : f32
    %29 = vector.broadcast %cst_14 : f32 to vector<8x1xf32>
    %30 = arith.subf %29, %28 : vector<8x1xf32>
    %31 = math.exp %30 : vector<8x1xf32>
    %cst_15 = arith.constant 1.000000e+00 : f32
    %32 = vector.broadcast %cst_15 : f32 to vector<8x1xf32>
    %33 = arith.addf %32, %31 : vector<8x1xf32>
    %34 = math.log %33 : vector<8x1xf32>
    %35 = arith.subf %27, %34 : vector<8x1xf32>
    %cst_16 = arith.constant dense<0.000000e+00> : vector<8x1xf32>
    %36 = tpu.matmul %25, %35, %cst_16 {dimension_numbers = #tpu.dot_dimension_numbers<[1], [0], [0], [1], [0, 0, 1, 1], [], []>} : vector<8x8xf32>, vector<8x1xf32>, vector<8x1xf32> -> vector<8x1xf32>
    %37 = arith.subf %23, %36 : vector<8x1xf32>
    %cst_17 = arith.constant 1.000000e+00 : f32
    %38 = vector.broadcast %cst_17 : f32 to vector<1x8xf32>
    %c0_18 = arith.constant 0 : index
    %c0_19 = arith.constant 0 : index
    %39 = vector.load %arg7[%c0_18, %c0_19] : memref<8x8xf32, #tpu.memory_space<vmem>>, vector<8x8xf32>
    %40 = vector.broadcast %37 : vector<8x1xf32> to vector<8x8xf32>
    %41 = arith.mulf %39, %40 : vector<8x8xf32>
    %cst_20 = arith.constant dense<0.000000e+00> : vector<1x8xf32>
    %42 = tpu.matmul %38, %41, %cst_20 {dimension_numbers = #tpu.dot_dimension_numbers<[1], [0], [0], [1], [0, 0, 1, 1], [], []>} : vector<1x8xf32>, vector<8x8xf32>, vector<1x8xf32> -> vector<1x8xf32>
    %c0_21 = arith.constant 0 : index
    %c0_22 = arith.constant 0 : index
    %43 = vector.load %arg13[%c0_21, %c0_22] : memref<1x1xf32, #tpu.memory_space<vmem>>, vector<1x1xf32>
    %cst_23 = arith.constant 5.000000e-01 : f32
    %44 = vector.broadcast %cst_23 : f32 to vector<8x8xf32>
    %45 = arith.cmpf ogt, %25, %44 : vector<8x8xf32>
    %cst_24 = arith.constant -1.000000e+30 : f32
    %46 = vector.shape_cast %42 : vector<1x8xf32> to vector<1x8xf32>
    %47 = vector.broadcast %46 : vector<1x8xf32> to vector<8x8xf32>
    %48 = vector.broadcast %cst_24 : f32 to vector<8x8xf32>
    %49 = arith.select %45, %47, %48 : vector<8x8xi1>, vector<8x8xf32>
    %cst_25 = arith.constant dense<0xFF800000> : vector<8xf32>
    %50 = vector.multi_reduction <maximumf>, %49, %cst_25 [1] : vector<8x8xf32> to vector<8xf32>
    %51 = vector.shape_cast %50 : vector<8xf32> to vector<8x1xf32>
    %52 = vector.broadcast %43 : vector<1x1xf32> to vector<8x1xf32>
    %53 = arith.maximumf %51, %52 : vector<8x1xf32>
    %cst_26 = arith.constant 5.000000e-01 : f32
    %54 = vector.broadcast %cst_26 : f32 to vector<8x8xf32>
    %55 = arith.cmpf ogt, %25, %54 : vector<8x8xf32>
    %56 = vector.broadcast %42 : vector<1x8xf32> to vector<8x8xf32>
    %57 = vector.broadcast %53 : vector<8x1xf32> to vector<8x8xf32>
    %58 = arith.subf %56, %57 : vector<8x8xf32>
    %cst_27 = arith.constant -1.000000e+30 : f32
    %59 = vector.broadcast %cst_27 : f32 to vector<8x8xf32>
    %60 = arith.select %55, %58, %59 : vector<8x8xi1>, vector<8x8xf32>
    %61 = math.exp %60 : vector<8x8xf32>
    %cst_28 = arith.constant dense<0.000000e+00> : vector<8x8xf32>
    %62 = tpu.matmul %12, %15, %cst_28 {dimension_numbers = #tpu.dot_dimension_numbers<[1], [1], [0], [0], [0, 0, 1, 0], [], []>} : vector<8x32xf32>, vector<8x32xf32>, vector<8x8xf32> -> vector<8x8xf32>
    %63 = arith.mulf %62, %61 : vector<8x8xf32>
    %cst_29 = arith.constant dense<0.000000e+00> : vector<8x32xf32>
    %64 = tpu.matmul %63, %16, %cst_29 {dimension_numbers = #tpu.dot_dimension_numbers<[1], [0], [0], [1], [0, 0, 1, 1], [], []>} : vector<8x8xf32>, vector<8x32xf32>, vector<8x32xf32> -> vector<8x32xf32>
    %65 = vector.broadcast %43 : vector<1x1xf32> to vector<8x1xf32>
    %66 = arith.subf %65, %53 : vector<8x1xf32>
    %67 = math.exp %66 : vector<8x1xf32>
    %c0_30 = arith.constant 0 : index
    %c0_31 = arith.constant 0 : index
    %68 = vector.load %arg11[%c0_30, %c0_31] : memref<32x32xf32, #tpu.memory_space<vmem>>, vector<32x32xf32>
    %cst_32 = arith.constant dense<0.000000e+00> : vector<8x32xf32>
    %69 = tpu.matmul %12, %68, %cst_32 {dimension_numbers = #tpu.dot_dimension_numbers<[1], [0], [0], [1], [0, 0, 1, 1], [], []>} : vector<8x32xf32>, vector<32x32xf32>, vector<8x32xf32> -> vector<8x32xf32>
    %70 = vector.broadcast %67 : vector<8x1xf32> to vector<8x32xf32>
    %71 = arith.mulf %70, %69 : vector<8x32xf32>
    %72 = arith.addf %71, %64 : vector<8x32xf32>
    %c0_33 = arith.constant 0 : index
    %c0_34 = arith.constant 0 : index
    %73 = vector.load %arg12[%c0_33, %c0_34] : memref<1x32xf32, #tpu.memory_space<vmem>>, vector<1x32xf32>
    %74 = vector.broadcast %73 : vector<1x32xf32> to vector<8x32xf32>
    %75 = arith.mulf %12, %74 : vector<8x32xf32>
    %cst_35 = arith.constant dense<0.000000e+00> : vector<8xf32>
    %76 = vector.multi_reduction <add>, %75, %cst_35 [1] : vector<8x32xf32> to vector<8xf32>
    %77 = vector.shape_cast %76 : vector<8xf32> to vector<8x1xf32>
    %78 = arith.mulf %67, %77 : vector<8x1xf32>
    %cst_36 = arith.constant dense<0.000000e+00> : vector<8xf32>
    %79 = vector.multi_reduction <add>, %63, %cst_36 [1] : vector<8x8xf32> to vector<8xf32>
    %80 = vector.shape_cast %79 : vector<8xf32> to vector<8x1xf32>
    %81 = arith.addf %78, %80 : vector<8x1xf32>
    %82 = math.absf %81 : vector<8x1xf32>
    %83 = arith.addf %36, %53 : vector<8x1xf32>
    %cst_37 = arith.constant 0.000000e+00 : f32
    %84 = vector.broadcast %cst_37 : f32 to vector<8x1xf32>
    %85 = arith.subf %84, %83 : vector<8x1xf32>
    %86 = math.exp %85 : vector<8x1xf32>
    %87 = arith.maximumf %82, %86 : vector<8x1xf32>
    %88 = arith.mulf %22, %72 : vector<8x32xf32>
    %89 = tpu.reciprocal %87 {approx = true} : vector<8x1xf32> -> vector<8x1xf32>
    %90 = vector.broadcast %89 : vector<8x1xf32> to vector<8x32xf32>
    %91 = arith.mulf %88, %90 : vector<8x32xf32>
    %cst_38 = arith.constant dense<0.000000e+00> : vector<8xf32>
    %92 = vector.multi_reduction <add>, %91, %cst_38 [1] : vector<8x32xf32> to vector<8xf32>
    %93 = vector.shape_cast %92 : vector<8xf32> to vector<8x1xf32>
    %cst_39 = arith.constant 3.200000e+01 : f32
    %94 = vector.broadcast %cst_39 : f32 to vector<8x1xf32>
    %95 = arith.divf %93, %94 : vector<8x1xf32>
    %96 = vector.broadcast %95 : vector<8x1xf32> to vector<8x32xf32>
    %97 = arith.subf %91, %96 : vector<8x32xf32>
    %98 = arith.mulf %97, %97 : vector<8x32xf32>
    %cst_40 = arith.constant dense<0.000000e+00> : vector<8xf32>
    %99 = vector.multi_reduction <add>, %98, %cst_40 [1] : vector<8x32xf32> to vector<8xf32>
    %100 = vector.shape_cast %99 : vector<8xf32> to vector<8x1xf32>
    %cst_41 = arith.constant 3.200000e+01 : f32
    %101 = vector.broadcast %cst_41 : f32 to vector<8x1xf32>
    %102 = arith.divf %100, %101 : vector<8x1xf32>
    %103 = vector.broadcast %95 : vector<8x1xf32> to vector<8x32xf32>
    %104 = arith.subf %91, %103 : vector<8x32xf32>
    %cst_42 = arith.constant 9.99999974E-6 : f32
    %105 = vector.broadcast %cst_42 : f32 to vector<8x1xf32>
    %106 = arith.addf %102, %105 : vector<8x1xf32>
    %107 = math.rsqrt %106 : vector<8x1xf32>
    %108 = vector.broadcast %107 : vector<8x1xf32> to vector<8x32xf32>
    %109 = arith.mulf %104, %108 : vector<8x32xf32>
    %c0_43 = arith.constant 0 : index
    %c0_44 = arith.constant 0 : index
    %110 = vector.load %arg8[%c0_43, %c0_44] : memref<1x32xf32, #tpu.memory_space<vmem>>, vector<1x32xf32>
    %111 = vector.broadcast %110 : vector<1x32xf32> to vector<8x32xf32>
    %112 = arith.mulf %109, %111 : vector<8x32xf32>
    %c0_45 = arith.constant 0 : index
    %c0_46 = arith.constant 0 : index
    %113 = vector.load %arg9[%c0_45, %c0_46] : memref<1x32xf32, #tpu.memory_space<vmem>>, vector<1x32xf32>
    %114 = vector.broadcast %113 : vector<1x32xf32> to vector<8x32xf32>
    %115 = arith.addf %112, %114 : vector<8x32xf32>
    %c0_47 = arith.constant 0 : index
    %c0_48 = arith.constant 0 : index
    %c0_49 = arith.constant 0 : index
    %116 = vector.load %arg10[%c0_47, %c0_48, %c0_49] : memref<1x8x32xf32, #tpu.memory_space<vmem>>, vector<1x8x32xf32>
    %117 = vector.shape_cast %116 : vector<1x8x32xf32> to vector<8x32xf32>
    %118 = vector.shape_cast %115 : vector<8x32xf32> to vector<1x8x32xf32>
    tpu.vector_store %arg10[%c0_47, %c0_48, %c0_49], %118 {strides = array<i32>} : memref<1x8x32xf32, #tpu.memory_space<vmem>>, vector<1x8x32xf32>,
    %119 = vector.extract_strided_slice %53 {offsets = [7, 0], sizes = [1, 1], strides = [1, 1]} : vector<8x1xf32> to vector<1x1xf32>
    %120 = arith.subf %43, %119 : vector<1x1xf32>
    %121 = math.exp %120 : vector<1x1xf32>
    %122 = vector.broadcast %119 : vector<1x1xf32> to vector<8x1xf32>
    %123 = arith.subf %37, %122 : vector<8x1xf32>
    %124 = math.exp %123 : vector<8x1xf32>
    %125 = vector.broadcast %124 : vector<8x1xf32> to vector<8x32xf32>
    %126 = arith.mulf %125, %15 : vector<8x32xf32>
    %c0_50 = arith.constant 0 : index
    %c0_51 = arith.constant 0 : index
    %127 = vector.load %arg11[%c0_50, %c0_51] : memref<32x32xf32, #tpu.memory_space<vmem>>, vector<32x32xf32>
    %128 = vector.broadcast %121 : vector<1x1xf32> to vector<32x32xf32>
    %129 = arith.mulf %128, %127 : vector<32x32xf32>
    %cst_52 = arith.constant dense<0.000000e+00> : vector<32x32xf32>
    %130 = tpu.matmul %126, %16, %cst_52 {dimension_numbers = #tpu.dot_dimension_numbers<[0], [0], [1], [1], [0, 1, 1, 1], [], []>} : vector<8x32xf32>, vector<8x32xf32>, vector<32x32xf32> -> vector<32x32xf32>
    %131 = arith.addf %129, %130 : vector<32x32xf32>
    %c0_53 = arith.constant 0 : index
    %c0_54 = arith.constant 0 : index
    %132 = vector.load %arg11[%c0_53, %c0_54] : memref<32x32xf32, #tpu.memory_space<vmem>>, vector<32x32xf32>
    tpu.vector_store %arg11[%c0_53, %c0_54], %131 {strides = array<i32>} : memref<32x32xf32, #tpu.memory_space<vmem>>, vector<32x32xf32>,
    %c0_55 = arith.constant 0 : index
    %c0_56 = arith.constant 0 : index
    %133 = vector.load %arg12[%c0_55, %c0_56] : memref<1x32xf32, #tpu.memory_space<vmem>>, vector<1x32xf32>
    %134 = vector.broadcast %121 : vector<1x1xf32> to vector<1x32xf32>
    %135 = arith.mulf %134, %133 : vector<1x32xf32>
    %cst_57 = arith.constant dense<0.000000e+00> : vector<32xf32>
    %136 = vector.multi_reduction <add>, %126, %cst_57 [0] : vector<8x32xf32> to vector<32xf32>
    %137 = vector.shape_cast %136 : vector<32xf32> to vector<1x32xf32>
    %138 = arith.addf %135, %137 : vector<1x32xf32>
    %c0_58 = arith.constant 0 : index
    %c0_59 = arith.constant 0 : index
    %139 = vector.load %arg12[%c0_58, %c0_59] : memref<1x32xf32, #tpu.memory_space<vmem>>, vector<1x32xf32>
    tpu.vector_store %arg12[%c0_58, %c0_59], %138 {strides = array<i32>} : memref<1x32xf32, #tpu.memory_space<vmem>>, vector<1x32xf32>,
    %140 = vector.extract_strided_slice %36 {offsets = [7, 0], sizes = [1, 1], strides = [1, 1]} : vector<8x1xf32> to vector<1x1xf32>
    %141 = arith.addf %140, %119 : vector<1x1xf32>
    %c0_60 = arith.constant 0 : index
    %c0_61 = arith.constant 0 : index
    %142 = vector.load %arg13[%c0_60, %c0_61] : memref<1x1xf32, #tpu.memory_space<vmem>>, vector<1x1xf32>
    tpu.vector_store %arg13[%c0_60, %c0_61], %141 {strides = array<i32>} : memref<1x1xf32, #tpu.memory_space<vmem>>, vector<1x1xf32>,
    return
  }
  func.func @transform_0(%arg0: i32, %arg1: i32) -> (i32, i32, i32) {
    %c0_i32 = arith.constant 0 : i32
    %c0_i32_0 = arith.constant 0 : i32
    return %arg0, %arg1, %c0_i32 : i32, i32, i32
  }
  func.func @transform_1(%arg0: i32, %arg1: i32) -> (i32, i32) {
    %c0_i32 = arith.constant 0 : i32
    %c0_i32_0 = arith.constant 0 : i32
    return %arg1, %c0_i32 : i32, i32
  }
  func.func @transform_2(%arg0: i32, %arg1: i32) -> (i32, i32) {
    %c0_i32 = arith.constant 0 : i32
    %c0_i32_0 = arith.constant 0 : i32
    %c0_i32_1 = arith.constant 0 : i32
    return %c0_i32, %c0_i32_0 : i32, i32
  }
  func.func @transform_3(%arg0: i32, %arg1: i32) -> (i32, i32) {
    %c0_i32 = arith.constant 0 : i32
    %c0_i32_0 = arith.constant 0 : i32
    %c0_i32_1 = arith.constant 0 : i32
    return %c0_i32, %c0_i32_0 : i32, i32
  }
  func.func @transform_4(%arg0: i32, %arg1: i32) -> (i32, i32) {
    %c0_i32 = arith.constant 0 : i32
    %c0_i32_0 = arith.constant 0 : i32
    %c0_i32_1 = arith.constant 0 : i32
    return %c0_i32, %c0_i32_0 : i32, i32
  }
  func.func @transform_5(%arg0: i32, %arg1: i32) -> (i32, i32) {
    %c0_i32 = arith.constant 0 : i32
    %c0_i32_0 = arith.constant 0 : i32
    %c0_i32_1 = arith.constant 0 : i32
    return %c0_i32, %c0_i32_0 : i32, i32
  }
  func.func @transform_6(%arg0: i32, %arg1: i32) -> (i32, i32) {
    %c0_i32 = arith.constant 0 : i32
    %c0_i32_0 = arith.constant 0 : i32
    %c0_i32_1 = arith.constant 0 : i32
    return %c0_i32, %c0_i32_0 : i32, i32
  }
  func.func @transform_7(%arg0: i32, %arg1: i32) -> (i32, i32) {
    %c0_i32 = arith.constant 0 : i32
    %c0_i32_0 = arith.constant 0 : i32
    %c0_i32_1 = arith.constant 0 : i32
    return %c0_i32, %c0_i32_0 : i32, i32
  }
  func.func @transform_8(%arg0: i32, %arg1: i32) -> (i32, i32, i32) {
    %c0_i32 = arith.constant 0 : i32
    %c0_i32_0 = arith.constant 0 : i32
    return %arg0, %arg1, %c0_i32 : i32, i32, i32
  }
}

</mosaic_0001>

<llo_original>
// kernel: tpu_custom_call.1
$region0: #{tpu_custom_call.1}
  #allocation0 [shape = 'u32[]', space=smem, size = 0x4, offset = 0x4, fixed_abs, tag = 'smem constant byte address 0x4 - core index']
  #allocation1 [shape = 'u32[144,128]{1,0:T(1,128)}', space=vmem, size = 0x12000, scoped, tag = 'internal scratch']
  #allocation2 [shape = 'f32[32,32]{1,0:T(8,128)}', space=vmem, size = 0x4000, scoped, tag = 'scratch operand']
  #allocation3 [shape = 'f32[1,32]{1,0:T(1,128)}', space=vmem, size = 0x200, scoped, tag = 'scratch operand']
  #allocation4 [shape = 'f32[1,1]{1,0:T(1,128)}', space=vmem, size = 0x200, scoped, tag = 'scratch operand']
  %s0 = inlined_call_operand.hbm [shape: f32[2,16,32], index: 0, kind: input, shape index: {}]
  %s1 = inlined_call_operand.hbm [shape: f32[16,32], index: 1, kind: input, shape index: {}]
  %s2 = inlined_call_operand.hbm [shape: f32[32,256], index: 2, kind: input, shape index: {}]
  %s3 = inlined_call_operand.hbm [shape: f32[1,256], index: 3, kind: input, shape index: {}]
  %s4 = inlined_call_operand.hbm [shape: f32[8,8], index: 4, kind: input, shape index: {}]
  %s5 = inlined_call_operand.hbm [shape: f32[8,8], index: 5, kind: input, shape index: {}]
  %s6 = inlined_call_operand.hbm [shape: f32[1,32], index: 6, kind: input, shape index: {}]
  %s7 = inlined_call_operand.hbm [shape: f32[1,32], index: 7, kind: input, shape index: {}]
  %s8 = inlined_call_operand.hbm [shape: f32[2,16,32], index: 8, kind: output, shape index: {}]
  %s9 = sld [smem:[#allocation0]]
  $region101: #{tpu_custom_call.1} parent=0
    _
  %s11 = ssub.s32 1, %s9
  %s12 = scalar_select 0, %s11, %s9
  $region1: #{tpu_custom_call.1} parent=0
    #allocation5 [shape = 'u8[8192]{0}', space=vmem, size = 0x2000, scoped, tag = 'input window, operand 0']
    #allocation6 [shape = 's32[2]{0}', space=sflag, size = 0x8, scoped, tag = 'scoped memory for tpu_custom_call.1']
    #allocation7 [shape = 's32[2]{0}', space=sflag, size = 0x8, scoped, tag = 'scoped memory for tpu_custom_call.1']
    #allocation8 [shape = 'u8[8192]{0}', space=vmem, size = 0x2000, scoped, tag = 'input window, operand 1']
    #allocation9 [shape = 's32[2]{0}', space=sflag, size = 0x8, scoped, tag = 'scoped memory for tpu_custom_call.1']
    #allocation10 [shape = 'u8[32768]{0}', space=vmem, size = 0x8000, scoped, tag = 'input window, operand 2, single buffered']
    #allocation11 [shape = 'u8[1024]{0}', space=vmem, size = 0x400, scoped, tag = 'input window, operand 3, single buffered']
    #allocation12 [shape = 's32[1]{0}', space=sflag, size = 0x4, scoped, tag = 'scoped memory for tpu_custom_call.1']
    #allocation13 [shape = 'u8[4096]{0}', space=vmem, size = 0x1000, scoped, tag = 'input window, operand 4, single buffered']
    #allocation14 [shape = 'u8[4096]{0}', space=vmem, size = 0x1000, scoped, tag = 'input window, operand 5, single buffered']
    #allocation15 [shape = 's32[1]{0}', space=sflag, size = 0x4, scoped, tag = 'scoped memory for tpu_custom_call.1']
    #allocation16 [shape = 'u8[512]{0}', space=vmem, size = 0x400, scoped, tag = 'input window, operand 6, single buffered']
    #allocation17 [shape = 'u8[512]{0}', space=vmem, size = 0x400, scoped, tag = 'input window, operand 7, single buffered']
    #allocation18 [shape = 's32[1]{0}', space=sflag, size = 0x4, scoped, tag = 'scoped memory for tpu_custom_call.1']
    #allocation19 [shape = 'u8[8192]{0}', space=vmem, size = 0x2000, scoped, tag = 'output window, operand 0']
    %13 = vsyncpa [#allocation6], 0
    %s14 = scalar_lea.sflag [#allocation6], 1
    %15 = vsyncpa %s14, 0
    %16 = vsyncpa [#allocation9], 0
    %s17 = scalar_lea.sflag [#allocation9], 1
    %18 = vsyncpa %s17, 0
    %19 = vsyncpa [#allocation12], 0
    %20 = vsyncpa [#allocation15], 0
    %21 = vsyncpa [#allocation18], 0
    %22 = vsyncpa [#allocation7], 0
    %s23 = scalar_lea.sflag [#allocation7], 1
    %24 = vsyncpa %s23, 0
    loop: start=0, step=1, limit=6
    $region2: #{tpu_custom_call.1} parent=1 // loop_pre_header
      _
    $region3: #{tpu_custom_call.1} parent=1 // loop_header
      %s26 = sphi 0, %s30
      %p27 = scmp.ge.s32.totalorder %s26, 6
      %s33 = sphi 0, %s45
      %s34 = sphi 0, %s41
      %s35 = sphi 0, %s33
      %s36 = sphi 0, %s34
      %s37 = sphi 0, %s35
      %s38 = sphi 0, %s36
      %s50 = sphi 0, %s52
      %s53 = sphi 0, %s50
      %s54 = sphi 0, %s53
      %s70 = sphi 0, %s54
      %s76 = sphi 0, %s78
      %s79 = sphi 0, %s76
      %s80 = sphi 0, %s79
      %s96 = sphi 0, %s80
      %s100 = sphi 0, %s100
      %s102 = sphi 0, %s100
      %s103 = sphi 0, %s102
      %s117 = sphi 0, %s103
      %s121 = sphi 0, %s121
      %s123 = sphi 0, %s121
      %s124 = sphi 0, %s123
      %s138 = sphi 0, %s124
      %s142 = sphi 0, %s142
      %s144 = sphi 0, %s142
      %s145 = sphi 0, %s144
      %s159 = sphi 0, %s145
      %s163 = sphi 0, %s163
      %s165 = sphi 0, %s163
      %s166 = sphi 0, %s165
      %s180 = sphi 0, %s166
      %s184 = sphi 0, %s184
      %s186 = sphi 0, %s184
      %s187 = sphi 0, %s186
      %s201 = sphi 0, %s187
      %s205 = sphi 0, %s205
      %s207 = sphi 0, %s205
      %s208 = sphi 0, %s207
      %s222 = sphi 0, %s208
      %s230 = sphi 0, %s232
      %s233 = sphi 0, %s230
      %s234 = sphi 0, %s233
      %s250 = sphi 0, %s234
    $region4: #{tpu_custom_call.1} parent=1 // loop_header_branch
      %29 = sbr.rel (%p27) target = $region8
    $region5: #{tpu_custom_call.1} parent=1 // loop_body
      %s31 = ssub.s32 %s26, 1
      %s32 = ssub.s32 %s26, 2
      %s39 = sadd.s32 1, %s34
      %p40 = scmp.ge.s32.totalorder %s39, 2
      %s41 = scalar_select %p40, 0, %s39
      %s42 = sadd.s32 1, %s33
      %s43 = scalar_select %p40, %s42, %s33
      %p44 = scmp.ge.s32.totalorder %s43, 2
      %s45 = scalar_select %p44, 0, %s43
      %s46 = ssub.s32 %s33, %s45
      %s47 = ssub.s32 %s34, %s41
      %s48 = sor.u32 %s46, %s47
      %p49 = scmp.eq.s32.totalorder %s48, 0
      %s51 = sadd.s32 %s50, 1
      %s52 = scalar_select %p49, %s50, %s51
      %p55 = pneg %p49
      %p56 = scmp.eq.s32.totalorder %s26, 3
      %p57 = por %p55, %p56
      %p58 = scmp.ne.s32.totalorder %s50, %s53
      %p59 = scmp.eq.s32.totalorder %s26, 0
      %p60 = por %p58, %p59
      %p61 = scmp.ne.s32.totalorder %s50, %s53
      %p62 = scmp.eq.s32.totalorder %s31, 3
      %p63 = por %p61, %p62
      %p64 = scmp.ne.s32.totalorder %s53, %s54
      %p65 = scmp.eq.s32.totalorder %s31, 0
      %p66 = por %p64, %p65
      %p67 = scmp.ne.s32.totalorder %s53, %s54
      %p68 = scmp.eq.s32.totalorder %s32, 3
      %p69 = por %p67, %p68
      %p71 = scmp.ne.s32.totalorder %s54, %s70
      %p72 = scmp.eq.s32.totalorder %s32, 0
      %p73 = por %p71, %p72
      %s74 = ssub.s32 %s34, %s41
      %p75 = scmp.eq.s32.totalorder %s74, 0
      %s77 = sadd.s32 %s76, 1
      %s78 = scalar_select %p75, %s76, %s77
      %p81 = pneg %p75
      %p82 = scmp.eq.s32.totalorder %s26, 3
      %p83 = por %p81, %p82
      %p84 = scmp.ne.s32.totalorder %s76, %s79
      %p85 = scmp.eq.s32.totalorder %s26, 0
      %p86 = por %p84, %p85
      %p87 = scmp.ne.s32.totalorder %s76, %s79
      %p88 = scmp.eq.s32.totalorder %s31, 3
      %p89 = por %p87, %p88
      %p90 = scmp.ne.s32.totalorder %s79, %s80
      %p91 = scmp.eq.s32.totalorder %s31, 0
      %p92 = por %p90, %p91
      %p93 = scmp.ne.s32.totalorder %s79, %s80
      %p94 = scmp.eq.s32.totalorder %s32, 3
      %p95 = por %p93, %p94
      %p97 = scmp.ne.s32.totalorder %s80, %s96
      %p98 = scmp.eq.s32.totalorder %s32, 0
      %p99 = por %p97, %p98
      %s101 = sadd.s32 %s100, 1
      %p104 = scmp.eq.s32.totalorder %s26, 3
      %p105 = scmp.ne.s32.totalorder %s100, %s102
      %p106 = scmp.eq.s32.totalorder %s26, 0
      %p107 = por %p105, %p106
      %p108 = scmp.ne.s32.totalorder %s100, %s102
      %p109 = scmp.eq.s32.totalorder %s31, 3
      %p110 = por %p108, %p109
      %p111 = scmp.ne.s32.totalorder %s102, %s103
      %p112 = scmp.eq.s32.totalorder %s31, 0
      %p113 = por %p111, %p112
      %p114 = scmp.ne.s32.totalorder %s102, %s103
      %p115 = scmp.eq.s32.totalorder %s32, 3
      %p116 = por %p114, %p115
      %p118 = scmp.ne.s32.totalorder %s103, %s117
      %p119 = scmp.eq.s32.totalorder %s32, 0
      %p120 = por %p118, %p119
      %s122 = sadd.s32 %s121, 1
      %p125 = scmp.eq.s32.totalorder %s26, 3
      %p126 = scmp.ne.s32.totalorder %s121, %s123
      %p127 = scmp.eq.s32.totalorder %s26, 0
      %p128 = por %p126, %p127
      %p129 = scmp.ne.s32.totalorder %s121, %s123
      %p130 = scmp.eq.s32.totalorder %s31, 3
      %p131 = por %p129, %p130
      %p132 = scmp.ne.s32.totalorder %s123, %s124
      %p133 = scmp.eq.s32.totalorder %s31, 0
      %p134 = por %p132, %p133
      %p135 = scmp.ne.s32.totalorder %s123, %s124
      %p136 = scmp.eq.s32.totalorder %s32, 3
      %p137 = por %p135, %p136
      %p139 = scmp.ne.s32.totalorder %s124, %s138
      %p140 = scmp.eq.s32.totalorder %s32, 0
      %p141 = por %p139, %p140
      %s143 = sadd.s32 %s142, 1
      %p146 = scmp.eq.s32.totalorder %s26, 3
      %p147 = scmp.ne.s32.totalorder %s142, %s144
      %p148 = scmp.eq.s32.totalorder %s26, 0
      %p149 = por %p147, %p148
      %p150 = scmp.ne.s32.totalorder %s142, %s144
      %p151 = scmp.eq.s32.totalorder %s31, 3
      %p152 = por %p150, %p151
      %p153 = scmp.ne.s32.totalorder %s144, %s145
      %p154 = scmp.eq.s32.totalorder %s31, 0
      %p155 = por %p153, %p154
      %p156 = scmp.ne.s32.totalorder %s144, %s145
      %p157 = scmp.eq.s32.totalorder %s32, 3
      %p158 = por %p156, %p157
      %p160 = scmp.ne.s32.totalorder %s145, %s159
      %p161 = scmp.eq.s32.totalorder %s32, 0
      %p162 = por %p160, %p161
      %s164 = sadd.s32 %s163, 1
      %p167 = scmp.eq.s32.totalorder %s26, 3
      %p168 = scmp.ne.s32.totalorder %s163, %s165
      %p169 = scmp.eq.s32.totalorder %s26, 0
      %p170 = por %p168, %p169
      %p171 = scmp.ne.s32.totalorder %s163, %s165
      %p172 = scmp.eq.s32.totalorder %s31, 3
      %p173 = por %p171, %p172
      %p174 = scmp.ne.s32.totalorder %s165, %s166
      %p175 = scmp.eq.s32.totalorder %s31, 0
      %p176 = por %p174, %p175
      %p177 = scmp.ne.s32.totalorder %s165, %s166
      %p178 = scmp.eq.s32.totalorder %s32, 3
      %p179 = por %p177, %p178
      %p181 = scmp.ne.s32.totalorder %s166, %s180
      %p182 = scmp.eq.s32.totalorder %s32, 0
      %p183 = por %p181, %p182
      %s185 = sadd.s32 %s184, 1
      %p188 = scmp.eq.s32.totalorder %s26, 3
      %p189 = scmp.ne.s32.totalorder %s184, %s186
      %p190 = scmp.eq.s32.totalorder %s26, 0
      %p191 = por %p189, %p190
      %p192 = scmp.ne.s32.totalorder %s184, %s186
      %p193 = scmp.eq.s32.totalorder %s31, 3
      %p194 = por %p192, %p193
      %p195 = scmp.ne.s32.totalorder %s186, %s187
      %p196 = scmp.eq.s32.totalorder %s31, 0
      %p197 = por %p195, %p196
      %p198 = scmp.ne.s32.totalorder %s186, %s187
      %p199 = scmp.eq.s32.totalorder %s32, 3
      %p200 = por %p198, %p199
      %p202 = scmp.ne.s32.totalorder %s187, %s201
      %p203 = scmp.eq.s32.totalorder %s32, 0
      %p204 = por %p202, %p203
      %s206 = sadd.s32 %s205, 1
      %p209 = scmp.eq.s32.totalorder %s26, 3
      %p210 = scmp.ne.s32.totalorder %s205, %s207
      %p211 = scmp.eq.s32.totalorder %s26, 0
      %p212 = por %p210, %p211
      %p213 = scmp.ne.s32.totalorder %s205, %s207
      %p214 = scmp.eq.s32.totalorder %s31, 3
      %p215 = por %p213, %p214
      %p216 = scmp.ne.s32.totalorder %s207, %s208
      %p217 = scmp.eq.s32.totalorder %s31, 0
      %p218 = por %p216, %p217
      %p219 = scmp.ne.s32.totalorder %s207, %s208
      %p220 = scmp.eq.s32.totalorder %s32, 3
      %p221 = por %p219, %p220
      %p223 = scmp.ne.s32.totalorder %s208, %s222
      %p224 = scmp.eq.s32.totalorder %s32, 0
      %p225 = por %p223, %p224
      %s226 = ssub.s32 %s33, %s45
      %s227 = ssub.s32 %s34, %s41
      %s228 = sor.u32 %s226, %s227
      %p229 = scmp.eq.s32.totalorder %s228, 0
      %s231 = sadd.s32 %s230, 1
      %s232 = scalar_select %p229, %s230, %s231
      %p235 = pneg %p229
      %p236 = scmp.eq.s32.totalorder %s26, 3
      %p237 = por %p235, %p236
      %p238 = scmp.ne.s32.totalorder %s230, %s233
      %p239 = scmp.eq.s32.totalorder %s26, 0
      %p240 = por %p238, %p239
      %p241 = scmp.ne.s32.totalorder %s230, %s233
      %p242 = scmp.eq.s32.totalorder %s31, 3
      %p243 = por %p241, %p242
      %p244 = scmp.ne.s32.totalorder %s233, %s234
      %p245 = scmp.eq.s32.totalorder %s31, 0
      %p246 = por %p244, %p245
      %p247 = scmp.ne.s32.totalorder %s233, %s234
      %p248 = scmp.eq.s32.totalorder %s32, 3
      %p249 = por %p247, %p248
      %p251 = scmp.ne.s32.totalorder %s234, %s250
      %p252 = scmp.eq.s32.totalorder %s32, 0
      %p253 = por %p251, %p252
      %p254 = scmp.le.s32.totalorder 1, %s26
      %p255 = scmp.lt.s32.totalorder %s26, 5
      %p256 = pnand %p254, %p255
      %p257 = pneg %p256
      // Predicated region
      $region9: #{tpu_custom_call.1} parent=5 // pred_check
        _
      $region10: #{tpu_custom_call.1} parent=5 // pred_check_branch
        %259 = sbr.rel (%p256) target = $region12
      $region11: #{tpu_custom_call.1} parent=5 // pred_region
        %s260 = ssub.s32 %s26, 1
        // Predicated region
        $region13: #{tpu_custom_call.1} parent=11 // pred_check
          %p261 = pneg %p113
        $region14: #{tpu_custom_call.1} parent=11 // pred_check_branch
          %263 = sbr.rel (%p261) target = $region16
        $region15: #{tpu_custom_call.1} parent=11 // pred_region
          %s265 = ssub.s32 1024, 1024
          %266 = vsyncadd [#allocation9], %s265
          %s267 = sshll.u32 [#allocation10], 4
          %s268 = int_to_ptr.vmem [resolvable:$true] %s267
          %273 = dma.hbm_to_vmem [thread:$0]  %s2, 1024, %s268, [#allocation9], 256, 256, 16
        $region16: #{tpu_custom_call.1} parent=11 // pred_fallthru
          _
        // Predicated region
        $region17: #{tpu_custom_call.1} parent=11 // pred_check
          %p274 = pneg %p134
        $region18: #{tpu_custom_call.1} parent=11 // pred_check_branch
          %276 = sbr.rel (%p274) target = $region20
        $region19: #{tpu_custom_call.1} parent=11 // pred_region
          %s278 = ssub.s32 32, 32
          %279 = vsyncadd [#allocation12], %s278
          %s281 = sshll.u32 [#allocation11], 4
          %s282 = int_to_ptr.vmem [resolvable:$true] %s281
          %284 = dma.hbm_to_vmem [thread:$0]  %s3, 32, %s282, [#allocation12]
        $region20: #{tpu_custom_call.1} parent=11 // pred_fallthru
          _
        // Predicated region
        $region21: #{tpu_custom_call.1} parent=11 // pred_check
          %p285 = pneg %p155
        $region22: #{tpu_custom_call.1} parent=11 // pred_check_branch
          %287 = sbr.rel (%p285) target = $region24
        $region23: #{tpu_custom_call.1} parent=11 // pred_region
          %s289 = ssub.s32 128, 128
          %290 = vsyncadd [#allocation12], %s289
          %s292 = sshll.u32 [#allocation13], 4
          %s293 = int_to_ptr.vmem [resolvable:$true] %s292
          %295 = dma.hbm_to_vmem [thread:$0]  %s4, 128, %s293, [#allocation12]
        $region24: #{tpu_custom_call.1} parent=11 // pred_fallthru
          _
        // Predicated region
        $region25: #{tpu_custom_call.1} parent=11 // pred_check
          %p296 = pneg %p176
        $region26: #{tpu_custom_call.1} parent=11 // pred_check_branch
          %298 = sbr.rel (%p296) target = $region28
        $region27: #{tpu_custom_call.1} parent=11 // pred_region
          %s300 = ssub.s32 128, 128
          %301 = vsyncadd [#allocation15], %s300
          %s303 = sshll.u32 [#allocation14], 4
          %s304 = int_to_ptr.vmem [resolvable:$true] %s303
          %306 = dma.hbm_to_vmem [thread:$0]  %s5, 128, %s304, [#allocation15]
        $region28: #{tpu_custom_call.1} parent=11 // pred_fallthru
          _
        // Predicated region
        $region29: #{tpu_custom_call.1} parent=11 // pred_check
          %p307 = pneg %p197
        $region30: #{tpu_custom_call.1} parent=11 // pred_check_branch
          %309 = sbr.rel (%p307) target = $region32
        $region31: #{tpu_custom_call.1} parent=11 // pred_region
          %s311 = ssub.s32 16, 16
          %312 = vsyncadd [#allocation15], %s311
          %s314 = sshll.u32 [#allocation16], 4
          %s315 = int_to_ptr.vmem [resolvable:$true] %s314
          %317 = dma.hbm_to_vmem [thread:$0]  %s6, 16, %s315, [#allocation15]
        $region32: #{tpu_custom_call.1} parent=11 // pred_fallthru
          _
        // Predicated region
        $region33: #{tpu_custom_call.1} parent=11 // pred_check
          %p318 = pneg %p218
        $region34: #{tpu_custom_call.1} parent=11 // pred_check_branch
          %320 = sbr.rel (%p318) target = $region36
        $region35: #{tpu_custom_call.1} parent=11 // pred_region
          %s322 = ssub.s32 16, 16
          %323 = vsyncadd [#allocation18], %s322
          %s325 = sshll.u32 [#allocation17], 4
          %s326 = int_to_ptr.vmem [resolvable:$true] %s325
          %328 = dma.hbm_to_vmem [thread:$0]  %s7, 16, %s326, [#allocation18]
        $region36: #{tpu_custom_call.1} parent=11 // pred_fallthru
          _
      $region12: #{tpu_custom_call.1} parent=5 // pred_fallthru
        _
      %p329 = scmp.lt.s32.totalorder %s26, 4
      // Predicated region
      $region37: #{tpu_custom_call.1} parent=5 // pred_check
        %p330 = pneg %p329
      $region38: #{tpu_custom_call.1} parent=5 // pred_check_branch
        %332 = sbr.rel (%p330) target = $region40
      $region39: #{tpu_custom_call.1} parent=5 // pred_region
        // Predicated region
        $region41: #{tpu_custom_call.1} parent=39 // pred_check
          %p333 = pneg %p60
        $region42: #{tpu_custom_call.1} parent=39 // pred_check_branch
          %335 = sbr.rel (%p333) target = $region44
        $region43: #{tpu_custom_call.1} parent=39 // pred_region
          %s336 = sand.u32 %s50, 1
          %s337 = scalar_lea.sflag [#allocation6], %s336
          %s338 = sand.u32 %s50, 1
          %s339 = smul.addr %s338, 8
          %s340 = scalar_lea.vmem [#allocation5], %s339
          %s342 = ssub.s32 128, 128
          %343 = vsyncadd %s337, %s342
          %s344 = smul.addr %s33, 2
          %s345 = sadd.s32 %s34, %s344
          %s346 = smul.addr %s345, 128
          %s347 = scalar_lea.hbm %s0, %s346
          %s349 = sshll.u32 %s340, 4
          %s350 = int_to_ptr.vmem [resolvable:$true] %s349
          %352 = dma.hbm_to_vmem [thread:$0]  %s347, 128, %s350, %s337
        $region44: #{tpu_custom_call.1} parent=39 // pred_fallthru
          _
        // Predicated region
        $region45: #{tpu_custom_call.1} parent=39 // pred_check
          %p353 = pneg %p86
        $region46: #{tpu_custom_call.1} parent=39 // pred_check_branch
          %355 = sbr.rel (%p353) target = $region48
        $region47: #{tpu_custom_call.1} parent=39 // pred_region
          %s356 = sand.u32 %s26, 1
          %s357 = scalar_lea.sflag [#allocation9], %s356
          %s358 = sand.u32 %s76, 1
          %s359 = smul.addr %s358, 8
          %s360 = scalar_lea.vmem [#allocation8], %s359
          %s362 = ssub.s32 128, 128
          %363 = vsyncadd %s357, %s362
          %s364 = smul.addr %s34, 128
          %s365 = scalar_lea.hbm %s1, %s364
          %s367 = sshll.u32 %s360, 4
          %s368 = int_to_ptr.vmem [resolvable:$true] %s367
          %370 = dma.hbm_to_vmem [thread:$0]  %s365, 128, %s368, %s357
        $region48: #{tpu_custom_call.1} parent=39 // pred_fallthru
          _
      $region40: #{tpu_custom_call.1} parent=5 // pred_fallthru
        _
      %p371 = scmp.le.s32.totalorder 1, %s26
      %p372 = scmp.lt.s32.totalorder %s26, 5
      %p373 = pnand %p371, %p372
      %p374 = pneg %p373
      // Predicated region
      $region49: #{tpu_custom_call.1} parent=5 // pred_check
        _
      $region50: #{tpu_custom_call.1} parent=5 // pred_check_branch
        %376 = sbr.rel (%p373) target = $region52
      $region51: #{tpu_custom_call.1} parent=5 // pred_region
        %s377 = ssub.s32 %s26, 1
        %s378 = sand.u32 %s53, 1
        %s379 = scalar_lea.sflag [#allocation6], %s378
        %s380 = sand.u32 %s53, 1
        %s381 = smul.addr %s380, 8
        %s382 = scalar_lea.vmem [#allocation5], %s381
        // Predicated region
        $region53: #{tpu_custom_call.1} parent=51 // pred_check
          %p383 = pneg %p66
        $region54: #{tpu_custom_call.1} parent=51 // pred_check_branch
          %385 = sbr.rel (%p383) target = $region56
        $region55: #{tpu_custom_call.1} parent=51 // pred_region
          %386 = dma.done %s379, 128
        $region56: #{tpu_custom_call.1} parent=51 // pred_fallthru
          _
        %s387 = sand.u32 %s31, 1
        %s388 = scalar_lea.sflag [#allocation9], %s387
        %s389 = sand.u32 %s79, 1
        %s390 = smul.addr %s389, 8
        %s391 = scalar_lea.vmem [#allocation8], %s390
        // Predicated region
        $region57: #{tpu_custom_call.1} parent=51 // pred_check
          %p392 = pneg %p92
        $region58: #{tpu_custom_call.1} parent=51 // pred_check_branch
          %394 = sbr.rel (%p392) target = $region60
        $region59: #{tpu_custom_call.1} parent=51 // pred_region
          %395 = dma.done %s388, 128
        $region60: #{tpu_custom_call.1} parent=51 // pred_fallthru
          _
        // Predicated region
        $region61: #{tpu_custom_call.1} parent=51 // pred_check
          %p396 = pneg %p113
        $region62: #{tpu_custom_call.1} parent=51 // pred_check_branch
          %398 = sbr.rel (%p396) target = $region64
        $region63: #{tpu_custom_call.1} parent=51 // pred_region
          %399 = dma.done [#allocation9], 1024
        $region64: #{tpu_custom_call.1} parent=51 // pred_fallthru
          _
        // Predicated region
        $region65: #{tpu_custom_call.1} parent=51 // pred_check
          %p400 = pneg %p134
        $region66: #{tpu_custom_call.1} parent=51 // pred_check_branch
          %402 = sbr.rel (%p400) target = $region68
        $region67: #{tpu_custom_call.1} parent=51 // pred_region
          %403 = dma.done [#allocation12], 32
        $region68: #{tpu_custom_call.1} parent=51 // pred_fallthru
          _
        // Predicated region
        $region69: #{tpu_custom_call.1} parent=51 // pred_check
          %p404 = pneg %p155
        $region70: #{tpu_custom_call.1} parent=51 // pred_check_branch
          %406 = sbr.rel (%p404) target = $region72
        $region71: #{tpu_custom_call.1} parent=51 // pred_region
          %407 = dma.done [#allocation12], 128
        $region72: #{tpu_custom_call.1} parent=51 // pred_fallthru
          _
        // Predicated region
        $region73: #{tpu_custom_call.1} parent=51 // pred_check
          %p408 = pneg %p176
        $region74: #{tpu_custom_call.1} parent=51 // pred_check_branch
          %410 = sbr.rel (%p408) target = $region76
        $region75: #{tpu_custom_call.1} parent=51 // pred_region
          %411 = dma.done [#allocation15], 128
        $region76: #{tpu_custom_call.1} parent=51 // pred_fallthru
          _
        // Predicated region
        $region77: #{tpu_custom_call.1} parent=51 // pred_check
          %p412 = pneg %p197
        $region78: #{tpu_custom_call.1} parent=51 // pred_check_branch
          %414 = sbr.rel (%p412) target = $region80
        $region79: #{tpu_custom_call.1} parent=51 // pred_region
          %415 = dma.done [#allocation15], 16
        $region80: #{tpu_custom_call.1} parent=51 // pred_fallthru
          _
        // Predicated region
        $region81: #{tpu_custom_call.1} parent=51 // pred_check
          %p416 = pneg %p218
        $region82: #{tpu_custom_call.1} parent=51 // pred_check_branch
          %418 = sbr.rel (%p416) target = $region84
        $region83: #{tpu_custom_call.1} parent=51 // pred_region
          %419 = dma.done [#allocation18], 16
        $region84: #{tpu_custom_call.1} parent=51 // pred_fallthru
          _
        %s420 = sand.u32 %s53, 1
        %s421 = scalar_lea.sflag [#allocation6], %s420
        %s422 = sand.u32 %s53, 1
        %s423 = smul.addr %s422, 8
        %s424 = scalar_lea.vmem [#allocation5], %s423
        %p425 = pneg %p66
        %p426 = pneg %p63
        %s427 = sand.u32 %s31, 1
        %s428 = scalar_lea.sflag [#allocation9], %s427
        %s429 = sand.u32 %s79, 1
        %s430 = smul.addr %s429, 8
        %s431 = scalar_lea.vmem [#allocation8], %s430
        %p432 = pneg %p92
        %p433 = pneg %p89
        %p434 = pneg %p113
        %p435 = pneg %p110
        %p436 = pneg %p134
        %p437 = pneg %p131
        %p438 = pneg %p155
        %p439 = pneg %p152
        %p440 = pneg %p176
        %p441 = pneg %p173
        %p442 = pneg %p197
        %p443 = pneg %p194
        %p444 = pneg %p218
        %p445 = pneg %p215
        %p446 = pneg %p246
        %p447 = pneg %p243
        %s448 = sand.u32 %s233, 1
        %s449 = scalar_lea.sflag [#allocation7], %s448
        %s450 = sand.u32 %s233, 1
        %s451 = smul.addr %s450, 8
        %s452 = scalar_lea.vmem [#allocation19], %s451
        %p453 = scmp.eq.s32.totalorder %s36, 0
        // Predicated region
        $region85: #{tpu_custom_call.1} parent=51 // pred_check
          %p454 = pneg %p453
        $region86: #{tpu_custom_call.1} parent=51 // pred_check_branch
          %456 = sbr.rel (%p454) target = $region88
        $region87: #{tpu_custom_call.1} parent=51 // pred_region
          %vm457 = vcmask 261120
          %458 = vst.msk [vmem:[#allocation2] sm:$0xff] %vm457, 0.0
          %459 = vst.msk [vmem:[#allocation2 + $0x8] sm:$0xff] %vm457, 0.0
          %460 = vst.msk [vmem:[#allocation2 + $0x10] sm:$0xff] %vm457, 0.0
          %461 = vst.msk [vmem:[#allocation2 + $0x18] sm:$0xff] %vm457, 0.0
          %vm462 = vcmask 253952
          %463 = vst.msk [vmem:[#allocation3] sm:$0x1] %vm462, 0.0
          %vm464 = vcmask 0
          %465 = vst.msk [vmem:[#allocation4] sm:$0x1] %vm464, 0.0
        $region88: #{tpu_custom_call.1} parent=51 // pred_fallthru
          _
        %v466 = vld [vmem:[%s382] sm:$0xff]
        %v467 = vld [vmem:[%s391] sm:$0xff]
        %v468 = vadd.f32 %v466, %v467
        %v469 = vld [vmem:[#allocation10] sm:$0xff]
        %v470 = vld [vmem:[#allocation10 + $0x8] sm:$0xff]
        %v471 = vld [vmem:[#allocation10 + $0x10] sm:$0xff]
        %v472 = vld [vmem:[#allocation10 + $0x18] sm:$0xff]
        %v473 = vld [vmem:[#allocation10 + $0x20] sm:$0xff]
        %v474 = vld [vmem:[#allocation10 + $0x28] sm:$0xff]
        %v475 = vld [vmem:[#allocation10 + $0x30] sm:$0xff]
        %v476 = vld [vmem:[#allocation10 + $0x38] sm:$0xff]
        %v477 = vld [vmem:[#allocation11] sm:$0x3]
        %v479 = vlaneseq
        %v480 = vshrl.u32 %v479, 7
        %v481 = vsub.s32 0, %v480
        %v482 = vrot.slane %v477, %v481
        %v483 = vlaneseq
        %v484 = vshrl.u32 %v483, 7
        %v485 = vsub.s32 1, %v484
        %v486 = vrot.slane %v477, %v485
        %vm489 = vcmask 261120
        %v491 = vsel %vm489, %v468, 0
        %493 = vmatprep.subr.mxu0 %v470
        %494 = vmatpush1.msra.mxu0 %v469
        %495 = vmatprep.subr.mxu0 %v472
        %496 = vmatpush1.msra.mxu0 %v471
        %497 = vmatprep.subr.mxu0 %v474
        %498 = vmatpush1.msra.mxu0 %v473
        %499 = vmatprep.subr.mxu0 %v476
        %500 = vmatpush1.msra.mxu0 %v475
        %501 = vmatprep.subr.mxu0 0.0
        %502 = vmatpush1.msra.mxu0 0.0
        %503 = vmatprep.subr.mxu0 0.0
        %504 = vmatpush1.msra.mxu0 0.0
        %505 = vmatprep.subr.mxu0 0.0
        %506 = vmatpush1.msra.mxu0 0.0
        %507 = vmatprep.subr.mxu0 0.0
        %508 = vmatpush1.msra.mxu0 0.0
        %509 = vmatprep.subr.mxu0 0.0
        %510 = vmatpush1.msra.mxu0 0.0
        %511 = vmatprep.subr.mxu0 0.0
        %512 = vmatpush1.msra.mxu0 0.0
        %513 = vmatprep.subr.mxu0 0.0
        %514 = vmatpush1.msra.mxu0 0.0
        %515 = vmatprep.subr.mxu0 0.0
        %516 = vmatpush1.msra.mxu0 0.0
        %517 = vmatprep.subr.mxu0 0.0
        %518 = vmatpush1.msra.mxu0 0.0
        %519 = vmatprep.subr.mxu0 0.0
        %520 = vmatpush1.msra.mxu0 0.0
        %521 = vmatprep.subr.mxu0 0.0
        %522 = vmatpush1.msra.mxu0 0.0
        %523 = vmatprep.subr.mxu0 0.0
        %524 = vmatpush1.msra.mxu0 0.0
        %525 = vmatprep.subr.mxu0 0.0
        %526 = vmatpush1.msra.mxu0 0.0
        %527 = vmatprep.subr.mxu0 0.0
        %528 = vmatpush1.msra.mxu0 0.0
        %529 = vmatprep.subr.mxu0 0.0
        %530 = vmatpush1.msra.mxu0 0.0
        %531 = vmatprep.subr.mxu0 0.0
        %532 = vmatpush1.msra.mxu0 0.0
        %533 = vmatprep.subr.mxu0 0.0
        %534 = vmatpush1.msra.mxu0 0.0
        %535 = vmatprep.subr.mxu0 0.0
        %536 = vmatpush1.msra.mxu0 0.0
        %537 = vmatprep.subr.mxu0 0.0
        %538 = vmatpush1.msra.mxu0 0.0
        %539 = vmatprep.subr.mxu0 0.0
        %540 = vmatpush1.msra.mxu0 0.0
        %541 = vmatprep.subr.mxu0 0.0
        %542 = vmatpush1.msra.mxu0 0.0
        %543 = vmatprep.subr.mxu0 0.0
        %544 = vmatpush1.msra.mxu0 0.0
        %545 = vmatprep.subr.mxu0 0.0
        %546 = vmatpush1.msra.mxu0 0.0
        %547 = vmatprep.subr.mxu0 0.0
        %548 = vmatpush1.msra.mxu0 0.0
        %549 = vmatprep.subr.mxu0 0.0
        %550 = vmatpush1.msra.mxu0 0.0
        %551 = vmatprep.subr.mxu0 0.0
        %552 = vmatpush1.msra.mxu0 0.0
        %553 = vmatprep.subr.mxu0 0.0
        %554 = vmatpush1.msra.mxu0 0.0
        %555 = vmatprep.subr.mxu0 0.0
        %556 = vmatpush1.msra.mxu0 0.0
        %557 = vmatprep.mubr.f32.mxu0 0.0
        %558 = vmatmul.mubr.f32.gmra.mrb[0].mxu0 %v491
        %v559 = vpop.f32.mrb[0].mxu0
        %v560 = vadd.f32 %v482, %v559
        %v561 = vpop.f32.mrb[0].mxu0
        %v562 = vadd.f32 %v486, %v561
        %563 = vdwg.mxu0
        %v564 = vmul.f32 %v560, 0.17677669
        %v565 = vxor.u32 %v560, 2147483648
        %v566 = vmul.f32 %v565, 1.442695
        %v567 = vpow.pop %v566
        %v568 = vadd.f32 %v567, 1.0
        %v569 = vrcp.pop %v568
        %v570 = vmul.f32 1.0, %v569
        %v571 = vld [vmem:[#allocation13] sm:$0xff]
        %v572 = vmin.f32 %v562, 0.0
        %v573 = vand.u32 2147483647, %v562
        %v574 = vsub.f32 0.0, %v573
        %v575 = vmul.f32 %v574, 1.442695
        %v576 = vpow.pop %v575
        %v577 = vadd.f32 %v576, 1.0
        %v578 = vlog2.pop %v577
        %v579 = vmul.f32 %v578, 0.6931472
        %v580 = vsub.f32 %v572, %v579
        %582 = vrot.lane.b32.xlu0 %v580, 127
        %v583 = vpop.permute.xlu0 %582
        %vm585 = vcmask 64512
        %v587 = vsel %vm585, %v571, 0
        %589 = vmatprep.subr.mxu0 0.0
        %590 = vmatpush1.msra.mxu0 %v583
        %591 = vmatprep.subr.mxu0 0.0
        %592 = vmatpush1.msra.mxu0 0.0
        %593 = vmatprep.subr.mxu0 0.0
        %594 = vmatpush1.msra.mxu0 0.0
        %595 = vmatprep.subr.mxu0 0.0
        %596 = vmatpush1.msra.mxu0 0.0
        %597 = vmatprep.subr.mxu0 0.0
        %598 = vmatpush1.msra.mxu0 0.0
        %599 = vmatprep.subr.mxu0 0.0
        %600 = vmatpush1.msra.mxu0 0.0
        %601 = vmatprep.subr.mxu0 0.0
        %602 = vmatpush1.msra.mxu0 0.0
        %603 = vmatprep.subr.mxu0 0.0
        %604 = vmatpush1.msra.mxu0 0.0
        %605 = vmatprep.subr.mxu0 0.0
        %606 = vmatpush1.msra.mxu0 0.0
        %607 = vmatprep.subr.mxu0 0.0
        %608 = vmatpush1.msra.mxu0 0.0
        %609 = vmatprep.subr.mxu0 0.0
        %610 = vmatpush1.msra.mxu0 0.0
        %611 = vmatprep.subr.mxu0 0.0
        %612 = vmatpush1.msra.mxu0 0.0
        %613 = vmatprep.subr.mxu0 0.0
        %614 = vmatpush1.msra.mxu0 0.0
        %615 = vmatprep.subr.mxu0 0.0
        %616 = vmatpush1.msra.mxu0 0.0
        %617 = vmatprep.subr.mxu0 0.0
        %618 = vmatpush1.msra.mxu0 0.0
        %619 = vmatprep.subr.mxu0 0.0
        %620 = vmatpush1.msra.mxu0 0.0
        %621 = vmatprep.subr.mxu0 0.0
        %622 = vmatpush1.msra.mxu0 0.0
        %623 = vmatprep.subr.mxu0 0.0
        %624 = vmatpush1.msra.mxu0 0.0
        %625 = vmatprep.subr.mxu0 0.0
        %626 = vmatpush1.msra.mxu0 0.0
        %627 = vmatprep.subr.mxu0 0.0
        %628 = vmatpush1.msra.mxu0 0.0
        %629 = vmatprep.subr.mxu0 0.0
        %630 = vmatpush1.msra.mxu0 0.0
        %631 = vmatprep.subr.mxu0 0.0
        %632 = vmatpush1.msra.mxu0 0.0
        %633 = vmatprep.subr.mxu0 0.0
        %634 = vmatpush1.msra.mxu0 0.0
        %635 = vmatprep.subr.mxu0 0.0
        %636 = vmatpush1.msra.mxu0 0.0
        %637 = vmatprep.subr.mxu0 0.0
        %638 = vmatpush1.msra.mxu0 0.0
        %639 = vmatprep.subr.mxu0 0.0
        %640 = vmatpush1.msra.mxu0 0.0
        %641 = vmatprep.subr.mxu0 0.0
        %642 = vmatpush1.msra.mxu0 0.0
        %643 = vmatprep.subr.mxu0 0.0
        %644 = vmatpush1.msra.mxu0 0.0
        %645 = vmatprep.subr.mxu0 0.0
        %646 = vmatpush1.msra.mxu0 0.0
        %647 = vmatprep.subr.mxu0 0.0
        %648 = vmatpush1.msra.mxu0 0.0
        %649 = vmatprep.subr.mxu0 0.0
        %650 = vmatpush1.msra.mxu0 0.0
        %651 = vmatprep.subr.mxu0 0.0
        %652 = vmatpush1.msra.mxu0 0.0
        %653 = vmatprep.mubr.f32.mxu0 0.0
        %654 = vmatmul.mubr.f32.gmra.mrb[0].mxu0 %v587
        %v655 = vpop.f32.mrb[0].mxu0
        %v656 = vadd.f32 0.0, %v655
        %v657 = vpop.f32.mrb[0].mxu0
        %658 = vdwg.mxu0
        %v659 = vsub.f32 %v562, %v656
        %v660 = vld [vmem:[#allocation14] sm:$0xff]
        %662 = vset.pattern.permute.xlu0 0
        %663 = vperm.xlu0 %662, %v659
        %v664 = vpop.permute.xlu0 %663
        %v666 = vmul.f32 %v660, %v664
        %v668 = vsel %vm585, 1.0, 0
        %670 = vmatprep.subr.mxu0 0.0
        %671 = vmatpush1.msra.mxu0 %v666
        %672 = vmatprep.subr.mxu0 0.0
        %673 = vmatpush1.msra.mxu0 0.0
        %674 = vmatprep.subr.mxu0 0.0
        %675 = vmatpush1.msra.mxu0 0.0
        %676 = vmatprep.subr.mxu0 0.0
        %677 = vmatpush1.msra.mxu0 0.0
        %678 = vmatprep.subr.mxu0 0.0
        %679 = vmatpush1.msra.mxu0 0.0
        %680 = vmatprep.subr.mxu0 0.0
        %681 = vmatpush1.msra.mxu0 0.0
        %682 = vmatprep.subr.mxu0 0.0
        %683 = vmatpush1.msra.mxu0 0.0
        %684 = vmatprep.subr.mxu0 0.0
        %685 = vmatpush1.msra.mxu0 0.0
        %686 = vmatprep.subr.mxu0 0.0
        %687 = vmatpush1.msra.mxu0 0.0
        %688 = vmatprep.subr.mxu0 0.0
        %689 = vmatpush1.msra.mxu0 0.0
        %690 = vmatprep.subr.mxu0 0.0
        %691 = vmatpush1.msra.mxu0 0.0
        %692 = vmatprep.subr.mxu0 0.0
        %693 = vmatpush1.msra.mxu0 0.0
        %694 = vmatprep.subr.mxu0 0.0
        %695 = vmatpush1.msra.mxu0 0.0
        %696 = vmatprep.subr.mxu0 0.0
        %697 = vmatpush1.msra.mxu0 0.0
        %698 = vmatprep.subr.mxu0 0.0
        %699 = vmatpush1.msra.mxu0 0.0
        %700 = vmatprep.subr.mxu0 0.0
        %701 = vmatpush1.msra.mxu0 0.0
        %702 = vmatprep.subr.mxu0 0.0
        %703 = vmatpush1.msra.mxu0 0.0
        %704 = vmatprep.subr.mxu0 0.0
        %705 = vmatpush1.msra.mxu0 0.0
        %706 = vmatprep.subr.mxu0 0.0
        %707 = vmatpush1.msra.mxu0 0.0
        %708 = vmatprep.subr.mxu0 0.0
        %709 = vmatpush1.msra.mxu0 0.0
        %710 = vmatprep.subr.mxu0 0.0
        %711 = vmatpush1.msra.mxu0 0.0
        %712 = vmatprep.subr.mxu0 0.0
        %713 = vmatpush1.msra.mxu0 0.0
        %714 = vmatprep.subr.mxu0 0.0
        %715 = vmatpush1.msra.mxu0 0.0
        %716 = vmatprep.subr.mxu0 0.0
        %717 = vmatpush1.msra.mxu0 0.0
        %718 = vmatprep.subr.mxu0 0.0
        %719 = vmatpush1.msra.mxu0 0.0
        %720 = vmatprep.subr.mxu0 0.0
        %721 = vmatpush1.msra.mxu0 0.0
        %722 = vmatprep.subr.mxu0 0.0
        %723 = vmatpush1.msra.mxu0 0.0
        %724 = vmatprep.subr.mxu0 0.0
        %725 = vmatpush1.msra.mxu0 0.0
        %726 = vmatprep.subr.mxu0 0.0
        %727 = vmatpush1.msra.mxu0 0.0
        %728 = vmatprep.subr.mxu0 0.0
        %729 = vmatpush1.msra.mxu0 0.0
        %730 = vmatprep.subr.mxu0 0.0
        %731 = vmatpush1.msra.mxu0 0.0
        %732 = vmatprep.subr.mxu0 0.0
        %733 = vmatpush1.msra.mxu0 0.0
        %734 = vmatprep.mubr.f32.mxu0 0.0
        %735 = vmatmul.mubr.f32.gmra.mrb[0].mxu0 %v668
        %v736 = vpop.f32.mrb[0].mxu0
        %v737 = vadd.f32 0.0, %v736
        %v738 = vpop.f32.mrb[0].mxu0
        %739 = vdwg.mxu0
        %v740 = vld [vmem:[#allocation4] sm:$0x1]
        %vm741 = vcmp.gt.f32.partialorder %v571, 0.5
        %v742 = vlaneseq
        %v743 = vshrl.u32 %v742, 7
        %v744 = vsub.s32 0, %v743
        %v745 = vrot.slane %v737, %v744
        %v746 = vsel %vm741, %v745, -1e+30
        %v747 = vsel %vm585, %v746, -inf
        %748 = vmax.xlane.f32.xlu0 %v747
        %v749 = vpop.xlane.xlu0 %748
        %v751 = vlaneseq
        %v752 = vshrl.u32 %v751, 7
        %v753 = vsub.s32 0, %v752
        %v754 = vrot.slane %v740, %v753
        %v756 = vmax.f32 %v749, %v754
        %758 = vset.pattern.permute.xlu0 0
        %759 = vperm.xlu0 %758, %v756
        %v760 = vpop.permute.xlu0 %759
        %v762 = vsub.f32 %v745, %v760
        %v763 = vsel %vm741, %v762, -1e+30
        %v764 = vmul.f32 %v763, 1.442695
        %v765 = vpow.pop %v764
        %767 = vrot.lane.b32.xlu0 %v564, 96
        %v768 = vpop.permute.xlu0 %767
        %v770 = vsel %vm489, %v560, 0
        %v772 = vsel %vm489, %v768, 0
        %774 = vmatprep.subr.mxu0 0.0
        %775 = vmatpush1.xpose.msra.mxu0 %v772
        %776 = vmatprep.subr.mxu0 0.0
        %777 = vmatpush1.xpose.msra.mxu0 0.0
        %778 = vmatprep.subr.mxu0 0.0
        %779 = vmatpush1.xpose.msra.mxu0 0.0
        %780 = vmatprep.subr.mxu0 0.0
        %781 = vmatpush1.xpose.msra.mxu0 0.0
        %782 = vmatprep.subr.mxu0 0.0
        %783 = vmatpush1.xpose.msra.mxu0 0.0
        %784 = vmatprep.subr.mxu0 0.0
        %785 = vmatpush1.xpose.msra.mxu0 0.0
        %786 = vmatprep.subr.mxu0 0.0
        %787 = vmatpush1.xpose.msra.mxu0 0.0
        %788 = vmatprep.subr.mxu0 0.0
        %789 = vmatpush1.xpose.msra.mxu0 0.0
        %790 = vmatprep.subr.mxu0 0.0
        %791 = vmatpush1.xpose.msra.mxu0 0.0
        %792 = vmatprep.subr.mxu0 0.0
        %793 = vmatpush1.xpose.msra.mxu0 0.0
        %794 = vmatprep.subr.mxu0 0.0
        %795 = vmatpush1.xpose.msra.mxu0 0.0
        %796 = vmatprep.subr.mxu0 0.0
        %797 = vmatpush1.xpose.msra.mxu0 0.0
        %798 = vmatprep.subr.mxu0 0.0
        %799 = vmatpush1.xpose.msra.mxu0 0.0
        %800 = vmatprep.subr.mxu0 0.0
        %801 = vmatpush1.xpose.msra.mxu0 0.0
        %802 = vmatprep.subr.mxu0 0.0
        %803 = vmatpush1.xpose.msra.mxu0 0.0
        %804 = vmatprep.subr.mxu0 0.0
        %805 = vmatpush1.xpose.msra.mxu0 0.0
        %806 = vmatprep.subr.mxu0 0.0
        %807 = vmatpush1.xpose.msra.mxu0 0.0
        %808 = vmatprep.subr.mxu0 0.0
        %809 = vmatpush1.xpose.msra.mxu0 0.0
        %810 = vmatprep.subr.mxu0 0.0
        %811 = vmatpush1.xpose.msra.mxu0 0.0
        %812 = vmatprep.subr.mxu0 0.0
        %813 = vmatpush1.xpose.msra.mxu0 0.0
        %814 = vmatprep.subr.mxu0 0.0
        %815 = vmatpush1.xpose.msra.mxu0 0.0
        %816 = vmatprep.subr.mxu0 0.0
        %817 = vmatpush1.xpose.msra.mxu0 0.0
        %818 = vmatprep.subr.mxu0 0.0
        %819 = vmatpush1.xpose.msra.mxu0 0.0
        %820 = vmatprep.subr.mxu0 0.0
        %821 = vmatpush1.xpose.msra.mxu0 0.0
        %822 = vmatprep.subr.mxu0 0.0
        %823 = vmatpush1.xpose.msra.mxu0 0.0
        %824 = vmatprep.subr.mxu0 0.0
        %825 = vmatpush1.xpose.msra.mxu0 0.0
        %826 = vmatprep.subr.mxu0 0.0
        %827 = vmatpush1.xpose.msra.mxu0 0.0
        %828 = vmatprep.subr.mxu0 0.0
        %829 = vmatpush1.xpose.msra.mxu0 0.0
        %830 = vmatprep.subr.mxu0 0.0
        %831 = vmatpush1.xpose.msra.mxu0 0.0
        %832 = vmatprep.subr.mxu0 0.0
        %833 = vmatpush1.xpose.msra.mxu0 0.0
        %834 = vmatprep.subr.mxu0 0.0
        %835 = vmatpush1.xpose.msra.mxu0 0.0
        %836 = vmatprep.subr.mxu0 0.0
        %837 = vmatpush1.xpose.msra.mxu0 0.0
        %838 = vmatprep.mubr.f32.mxu0 0.0
        %839 = vmatmul.mubr.f32.gmra.mrb[0].mxu0 %v770
        %v840 = vpop.f32.mrb[0].mxu0
        %v841 = vadd.f32 0.0, %v840
        %v842 = vpop.f32.mrb[0].mxu0
        %843 = vdwg.mxu0
        %v844 = vmul.f32 %v841, %v765
        %845 = vrot.lane.b32.xlu0 %v560, 64
        %v846 = vpop.permute.xlu0 %845
        %v849 = vsel %vm585, %v844, 0
        %851 = vmatprep.subr.mxu0 0.0
        %852 = vmatpush1.msra.mxu0 %v846
        %853 = vmatprep.subr.mxu0 0.0
        %854 = vmatpush1.msra.mxu0 0.0
        %855 = vmatprep.subr.mxu0 0.0
        %856 = vmatpush1.msra.mxu0 0.0
        %857 = vmatprep.subr.mxu0 0.0
        %858 = vmatpush1.msra.mxu0 0.0
        %859 = vmatprep.subr.mxu0 0.0
        %860 = vmatpush1.msra.mxu0 0.0
        %861 = vmatprep.subr.mxu0 0.0
        %862 = vmatpush1.msra.mxu0 0.0
        %863 = vmatprep.subr.mxu0 0.0
        %864 = vmatpush1.msra.mxu0 0.0
        %865 = vmatprep.subr.mxu0 0.0
        %866 = vmatpush1.msra.mxu0 0.0
        %867 = vmatprep.subr.mxu0 0.0
        %868 = vmatpush1.msra.mxu0 0.0
        %869 = vmatprep.subr.mxu0 0.0
        %870 = vmatpush1.msra.mxu0 0.0
        %871 = vmatprep.subr.mxu0 0.0
        %872 = vmatpush1.msra.mxu0 0.0
        %873 = vmatprep.subr.mxu0 0.0
        %874 = vmatpush1.msra.mxu0 0.0
        %875 = vmatprep.subr.mxu0 0.0
        %876 = vmatpush1.msra.mxu0 0.0
        %877 = vmatprep.subr.mxu0 0.0
        %878 = vmatpush1.msra.mxu0 0.0
        %879 = vmatprep.subr.mxu0 0.0
        %880 = vmatpush1.msra.mxu0 0.0
        %881 = vmatprep.subr.mxu0 0.0
        %882 = vmatpush1.msra.mxu0 0.0
        %883 = vmatprep.subr.mxu0 0.0
        %884 = vmatpush1.msra.mxu0 0.0
        %885 = vmatprep.subr.mxu0 0.0
        %886 = vmatpush1.msra.mxu0 0.0
        %887 = vmatprep.subr.mxu0 0.0
        %888 = vmatpush1.msra.mxu0 0.0
        %889 = vmatprep.subr.mxu0 0.0
        %890 = vmatpush1.msra.mxu0 0.0
        %891 = vmatprep.subr.mxu0 0.0
        %892 = vmatpush1.msra.mxu0 0.0
        %893 = vmatprep.subr.mxu0 0.0
        %894 = vmatpush1.msra.mxu0 0.0
        %895 = vmatprep.subr.mxu0 0.0
        %896 = vmatpush1.msra.mxu0 0.0
        %897 = vmatprep.subr.mxu0 0.0
        %898 = vmatpush1.msra.mxu0 0.0
        %899 = vmatprep.subr.mxu0 0.0
        %900 = vmatpush1.msra.mxu0 0.0
        %901 = vmatprep.subr.mxu0 0.0
        %902 = vmatpush1.msra.mxu0 0.0
        %903 = vmatprep.subr.mxu0 0.0
        %904 = vmatpush1.msra.mxu0 0.0
        %905 = vmatprep.subr.mxu0 0.0
        %906 = vmatpush1.msra.mxu0 0.0
        %907 = vmatprep.subr.mxu0 0.0
        %908 = vmatpush1.msra.mxu0 0.0
        %909 = vmatprep.subr.mxu0 0.0
        %910 = vmatpush1.msra.mxu0 0.0
        %911 = vmatprep.subr.mxu0 0.0
        %912 = vmatpush1.msra.mxu0 0.0
        %913 = vmatprep.subr.mxu0 0.0
        %914 = vmatpush1.msra.mxu0 0.0
        %915 = vmatprep.mubr.f32.mxu0 0.0
        %916 = vmatmul.mubr.f32.gmra.mrb[0].mxu0 %v849
        %v917 = vpop.f32.mrb[0].mxu0
        %v918 = vadd.f32 0.0, %v917
        %v919 = vpop.f32.mrb[0].mxu0
        %920 = vdwg.mxu0
        %v921 = vsub.f32 %v754, %v756
        %v922 = vmul.f32 %v921, 1.442695
        %v923 = vpow.pop %v922
        %v924 = vld [vmem:[#allocation2] sm:$0xff]
        %v925 = vld [vmem:[#allocation2 + $0x8] sm:$0xff]
        %v926 = vld [vmem:[#allocation2 + $0x10] sm:$0xff]
        %v927 = vld [vmem:[#allocation2 + $0x18] sm:$0xff]
        %928 = vmatprep.subr.mxu0 0.0
        %929 = vmatpush1.msra.mxu0 %v924
        %930 = vmatprep.subr.mxu0 0.0
        %931 = vmatpush1.msra.mxu0 %v925
        %932 = vmatprep.subr.mxu0 0.0
        %933 = vmatpush1.msra.mxu0 %v926
        %934 = vmatprep.subr.mxu0 0.0
        %935 = vmatpush1.msra.mxu0 %v927
        %936 = vmatprep.subr.mxu0 0.0
        %937 = vmatpush1.msra.mxu0 0.0
        %938 = vmatprep.subr.mxu0 0.0
        %939 = vmatpush1.msra.mxu0 0.0
        %940 = vmatprep.subr.mxu0 0.0
        %941 = vmatpush1.msra.mxu0 0.0
        %942 = vmatprep.subr.mxu0 0.0
        %943 = vmatpush1.msra.mxu0 0.0
        %944 = vmatprep.subr.mxu0 0.0
        %945 = vmatpush1.msra.mxu0 0.0
        %946 = vmatprep.subr.mxu0 0.0
        %947 = vmatpush1.msra.mxu0 0.0
        %948 = vmatprep.subr.mxu0 0.0
        %949 = vmatpush1.msra.mxu0 0.0
        %950 = vmatprep.subr.mxu0 0.0
        %951 = vmatpush1.msra.mxu0 0.0
        %952 = vmatprep.subr.mxu0 0.0
        %953 = vmatpush1.msra.mxu0 0.0
        %954 = vmatprep.subr.mxu0 0.0
        %955 = vmatpush1.msra.mxu0 0.0
        %956 = vmatprep.subr.mxu0 0.0
        %957 = vmatpush1.msra.mxu0 0.0
        %958 = vmatprep.subr.mxu0 0.0
        %959 = vmatpush1.msra.mxu0 0.0
        %960 = vmatprep.subr.mxu0 0.0
        %961 = vmatpush1.msra.mxu0 0.0
        %962 = vmatprep.subr.mxu0 0.0
        %963 = vmatpush1.msra.mxu0 0.0
        %964 = vmatprep.subr.mxu0 0.0
        %965 = vmatpush1.msra.mxu0 0.0
        %966 = vmatprep.subr.mxu0 0.0
        %967 = vmatpush1.msra.mxu0 0.0
        %968 = vmatprep.subr.mxu0 0.0
        %969 = vmatpush1.msra.mxu0 0.0
        %970 = vmatprep.subr.mxu0 0.0
        %971 = vmatpush1.msra.mxu0 0.0
        %972 = vmatprep.subr.mxu0 0.0
        %973 = vmatpush1.msra.mxu0 0.0
        %974 = vmatprep.subr.mxu0 0.0
        %975 = vmatpush1.msra.mxu0 0.0
        %976 = vmatprep.subr.mxu0 0.0
        %977 = vmatpush1.msra.mxu0 0.0
        %978 = vmatprep.subr.mxu0 0.0
        %979 = vmatpush1.msra.mxu0 0.0
        %980 = vmatprep.subr.mxu0 0.0
        %981 = vmatpush1.msra.mxu0 0.0
        %982 = vmatprep.subr.mxu0 0.0
        %983 = vmatpush1.msra.mxu0 0.0
        %984 = vmatprep.subr.mxu0 0.0
        %985 = vmatpush1.msra.mxu0 0.0
        %986 = vmatprep.subr.mxu0 0.0
        %987 = vmatpush1.msra.mxu0 0.0
        %988 = vmatprep.subr.mxu0 0.0
        %989 = vmatpush1.msra.mxu0 0.0
        %990 = vmatprep.subr.mxu0 0.0
        %991 = vmatpush1.msra.mxu0 0.0
        %992 = vmatprep.mubr.f32.mxu0 0.0
        %993 = vmatmul.mubr.f32.gmra.mrb[0].mxu0 %v770
        %v994 = vpop.f32.mrb[0].mxu0
        %v995 = vadd.f32 0.0, %v994
        %v996 = vpop.f32.mrb[0].mxu0
        %997 = vdwg.mxu0
        %999 = vset.pattern.permute.xlu0 0
        %1000 = vperm.xlu0 %999, %v923
        %v1001 = vpop.permute.xlu0 %1000
        %v1003 = vmul.f32 %v1001, %v995
        %v1004 = vadd.f32 %v1003, %v918
        %v1005 = vld [vmem:[#allocation3] sm:$0x1]
        %v1007 = vlaneseq
        %v1008 = vshrl.u32 %v1007, 7
        %v1009 = vsub.s32 0, %v1008
        %v1010 = vrot.slane %v1005, %v1009
        %v1012 = vmul.f32 %v560, %v1010
        %v1013 = vsel %vm489, %v1012, 0.0
        %1014 = vadd.xlane.f32.xlu0 %v1013
        %v1015 = vpop.xlane.xlu0 %1014
        %v1016 = vmul.f32 %v923, %v1015
        %v1017 = vsel %vm585, %v844, 0.0
        %1018 = vadd.xlane.f32.xlu0 %v1017
        %v1019 = vpop.xlane.xlu0 %1018
        %v1020 = vadd.f32 %v1016, %v1019
        %v1021 = vand.u32 2147483647, %v1020
        %v1022 = vadd.f32 %v656, %v756
        %v1023 = vsub.f32 0.0, %v1022
        %v1024 = vmul.f32 %v1023, 1.442695
        %v1025 = vpow.pop %v1024
        %v1026 = vmax.f32 %v1021, %v1025
        %1028 = vrot.lane.b32.xlu0 %v1004, 96
        %v1029 = vpop.permute.xlu0 %1028
        %v1031 = vmul.f32 %v570, %v1029
        %v1032 = vrcp.pop %v1026
        %1034 = vset.pattern.permute.xlu0 0
        %1035 = vperm.xlu0 %1034, %v1032
        %v1036 = vpop.permute.xlu0 %1035
        %v1038 = vmul.f32 %v1031, %v1036
        %1040 = vrot.lane.b32.xlu0 %v1038, 32
        %v1041 = vpop.permute.xlu0 %1040
        %v1043 = vsel %vm489, %v1041, 0.0
        %1044 = vadd.xlane.f32.xlu0 %v1043
        %v1045 = vpop.xlane.xlu0 %1044
        %v1046 = vrcp.pop 32.0
        %v1047 = vmul.f32 %v1045, %v1046
        %v1048 = vsub.f32 %v1038, %v1047
        %v1049 = vmul.f32 %v1048, %v1048
        %1051 = vrot.lane.b32.xlu0 %v1049, 32
        %v1052 = vpop.permute.xlu0 %1051
        %v1054 = vsel %vm489, %v1052, 0.0
        %1055 = vadd.xlane.f32.xlu0 %v1054
        %v1056 = vpop.xlane.xlu0 %1055
        %v1057 = vmul.f32 %v1056, %v1046
        %v1058 = vadd.f32 %v1057, 1e-05
        %v1059 = vrsqrt.pop %v1058
        %v1060 = vmul.f32 %v1048, %v1059
        %v1061 = vld [vmem:[#allocation16] sm:$0x1]
        %v1063 = vlaneseq
        %v1064 = vshrl.u32 %v1063, 7
        %v1065 = vsub.s32 0, %v1064
        %v1066 = vrot.slane %v1061, %v1065
        %1067 = vrot.lane.b32.xlu0 %v1066, 96
        %v1068 = vpop.permute.xlu0 %1067
        %v1070 = vmul.f32 %v1060, %v1068
        %v1071 = vld [vmem:[#allocation17] sm:$0x1]
        %v1073 = vlaneseq
        %v1074 = vshrl.u32 %v1073, 7
        %v1075 = vsub.s32 0, %v1074
        %v1076 = vrot.slane %v1071, %v1075
        %1077 = vrot.lane.b32.xlu0 %v1076, 96
        %v1078 = vpop.permute.xlu0 %1077
        %v1080 = vadd.f32 %v1070, %v1078
        %1082 = vrot.lane.b32.xlu0 %v1080, 32
        %v1083 = vpop.permute.xlu0 %1082
        %1085 = vst.msk [vmem:[%s452] sm:$0xff] %vm489, %v1083
        %v1086 = vcombine.high %v756, %v756
        %v1088 = vunpack.c.l.s4 1966171168
        %v1089 = vunpack.c.0.s8 %v1088
        %v1090 = vlaneseq
        %v1091 = vshrl.u32 %v1090, 7
        %v1092 = vsub.s32 %v1089, %v1091
        %v1093 = vrot.slane %v1086, %v1092
        %v1094 = vcombine.high %v1093, %v1093
        %v1096 = vunpack.c.l.s4 1966171168
        %v1097 = vunpack.c.0.s8 %v1096
        %v1098 = vlaneseq
        %v1099 = vshrl.u32 %v1098, 7
        %v1100 = vsub.s32 %v1097, %v1099
        %v1101 = vrot.slane %v1094, %v1100
        %v1102 = vcombine.high %v1101, %v1101
        %v1104 = vsub.f32 %v740, %v1102
        %v1105 = vmul.f32 %v1104, 1.442695
        %v1106 = vpow.pop %v1105
        %v1107 = vlaneseq
        %v1108 = vshrl.u32 %v1107, 7
        %v1109 = vsub.s32 7, %v1108
        %v1110 = vrot.slane %v756, %v1109
        %v1111 = vsub.f32 %v659, %v1110
        %v1112 = vmul.f32 %v1111, 1.442695
        %v1113 = vpow.pop %v1112
        %1115 = vset.pattern.permute.xlu0 0
        %1116 = vperm.xlu0 %1115, %v1113
        %v1117 = vpop.permute.xlu0 %1116
        %v1119 = vmul.f32 %v1117, %v564
        %v1120 = vld [vmem:[#allocation2] sm:$0xff]
        %v1121 = vld [vmem:[#allocation2 + $0x8] sm:$0xff]
        %v1122 = vld [vmem:[#allocation2 + $0x10] sm:$0xff]
        %v1123 = vld [vmem:[#allocation2 + $0x18] sm:$0xff]
        %v1125 = vlaneseq
        %v1126 = vshrl.u32 %v1125, 7
        %v1127 = vsub.s32 0, %v1126
        %v1128 = vrot.slane %v1106, %v1127
        %1129 = vset.pattern.permute.xlu0 0
        %1130 = vperm.xlu0 %1129, %v1128
        %v1131 = vpop.permute.xlu0 %1130
        %v1133 = vmul.f32 %v1131, %v1120
        %v1134 = vmul.f32 %v1131, %v1121
        %v1135 = vmul.f32 %v1131, %v1122
        %v1136 = vmul.f32 %v1131, %v1123
        %1138 = vrot.lane.b32.xlu0 %v1119, 96
        %v1139 = vpop.permute.xlu0 %1138
        %1141 = vxpose.xlu0.b32.start [1/16] %v1139, 128
        %1142 = vxpose.xlu0.b32.cont [2/16] 0.0, 128
        %1143 = vxpose.xlu0.b32.cont [3/16] 0.0, 128
        %1144 = vxpose.xlu0.b32.cont [4/16] 0.0, 128
        %1145 = vxpose.xlu0.b32.cont [5/16] 0.0, 128
        %1146 = vxpose.xlu0.b32.cont [6/16] 0.0, 128
        %1147 = vxpose.xlu0.b32.cont [7/16] 0.0, 128
        %1148 = vxpose.xlu0.b32.cont [8/16] 0.0, 128
        %1149 = vxpose.xlu0.b32.cont [9/16] 0.0, 128
        %1150 = vxpose.xlu0.b32.cont [10/16] 0.0, 128
        %1151 = vxpose.xlu0.b32.cont [11/16] 0.0, 128
        %1152 = vxpose.xlu0.b32.cont [12/16] 0.0, 128
        %1153 = vxpose.xlu0.b32.cont [13/16] 0.0, 128
        %1154 = vxpose.xlu0.b32.cont [14/16] 0.0, 128
        %1155 = vxpose.xlu0.b32.cont [15/16] 0.0, 128
        %1156 = vxpose.xlu0.b32.end [16/16] 0.0, 128
        %v1157 = vpop.trf.xlu0
        %v1158 = vpop.trf.xlu0
        %v1159 = vpop.trf.xlu0
        %v1160 = vpop.trf.xlu0
        %v1161 = vpop.trf.xlu0
        %v1162 = vpop.trf.xlu0
        %v1163 = vpop.trf.xlu0
        %v1164 = vpop.trf.xlu0
        %v1165 = vpop.trf.xlu0
        %v1166 = vpop.trf.xlu0
        %v1167 = vpop.trf.xlu0
        %v1168 = vpop.trf.xlu0
        %v1169 = vpop.trf.xlu0
        %v1170 = vpop.trf.xlu0
        %v1171 = vpop.trf.xlu0
        %v1172 = vpop.trf.xlu0
        %v1174 = vsel %vm585, %v1157, 0
        %v1177 = vsel %vm585, %v1158, 0
        %v1180 = vsel %vm585, %v1159, 0
        %v1183 = vsel %vm585, %v1160, 0
        %1185 = vmatprep.subr.mxu0 0.0
        %1186 = vmatpush1.msra.mxu0 %v846
        %1187 = vmatprep.subr.mxu0 0.0
        %1188 = vmatpush1.msra.mxu0 0.0
        %1189 = vmatprep.subr.mxu0 0.0
        %1190 = vmatpush1.msra.mxu0 0.0
        %1191 = vmatprep.subr.mxu0 0.0
        %1192 = vmatpush1.msra.mxu0 0.0
        %1193 = vmatprep.subr.mxu0 0.0
        %1194 = vmatpush1.msra.mxu0 0.0
        %1195 = vmatprep.subr.mxu0 0.0
        %1196 = vmatpush1.msra.mxu0 0.0
        %1197 = vmatprep.subr.mxu0 0.0
        %1198 = vmatpush1.msra.mxu0 0.0
        %1199 = vmatprep.subr.mxu0 0.0
        %1200 = vmatpush1.msra.mxu0 0.0
        %1201 = vmatprep.subr.mxu0 0.0
        %1202 = vmatpush1.msra.mxu0 0.0
        %1203 = vmatprep.subr.mxu0 0.0
        %1204 = vmatpush1.msra.mxu0 0.0
        %1205 = vmatprep.subr.mxu0 0.0
        %1206 = vmatpush1.msra.mxu0 0.0
        %1207 = vmatprep.subr.mxu0 0.0
        %1208 = vmatpush1.msra.mxu0 0.0
        %1209 = vmatprep.subr.mxu0 0.0
        %1210 = vmatpush1.msra.mxu0 0.0
        %1211 = vmatprep.subr.mxu0 0.0
        %1212 = vmatpush1.msra.mxu0 0.0
        %1213 = vmatprep.subr.mxu0 0.0
        %1214 = vmatpush1.msra.mxu0 0.0
        %1215 = vmatprep.subr.mxu0 0.0
        %1216 = vmatpush1.msra.mxu0 0.0
        %1217 = vmatprep.subr.mxu0 0.0
        %1218 = vmatpush1.msra.mxu0 0.0
        %1219 = vmatprep.subr.mxu0 0.0
        %1220 = vmatpush1.msra.mxu0 0.0
        %1221 = vmatprep.subr.mxu0 0.0
        %1222 = vmatpush1.msra.mxu0 0.0
        %1223 = vmatprep.subr.mxu0 0.0
        %1224 = vmatpush1.msra.mxu0 0.0
        %1225 = vmatprep.subr.mxu0 0.0
        %1226 = vmatpush1.msra.mxu0 0.0
        %1227 = vmatprep.subr.mxu0 0.0
        %1228 = vmatpush1.msra.mxu0 0.0
        %1229 = vmatprep.subr.mxu0 0.0
        %1230 = vmatpush1.msra.mxu0 0.0
        %1231 = vmatprep.subr.mxu0 0.0
        %1232 = vmatpush1.msra.mxu0 0.0
        %1233 = vmatprep.subr.mxu0 0.0
        %1234 = vmatpush1.msra.mxu0 0.0
        %1235 = vmatprep.subr.mxu0 0.0
        %1236 = vmatpush1.msra.mxu0 0.0
        %1237 = vmatprep.subr.mxu0 0.0
        %1238 = vmatpush1.msra.mxu0 0.0
        %1239 = vmatprep.subr.mxu0 0.0
        %1240 = vmatpush1.msra.mxu0 0.0
        %1241 = vmatprep.subr.mxu0 0.0
        %1242 = vmatpush1.msra.mxu0 0.0
        %1243 = vmatprep.subr.mxu0 0.0
        %1244 = vmatpush1.msra.mxu0 0.0
        %1245 = vmatprep.subr.mxu0 0.0
        %1246 = vmatpush1.msra.mxu0 0.0
        %1247 = vmatprep.subr.mxu0 0.0
        %1248 = vmatpush1.msra.mxu0 0.0
        %1249 = vmatprep.mubr.f32.mxu0 0.0
        %1250 = vmatmul.mubr.f32.gmra.mrb[0].mxu0 %v1174
        %v1251 = vpop.f32.mrb[0].mxu0
        %v1252 = vadd.f32 0.0, %v1251
        %v1253 = vpop.f32.mrb[0].mxu0
        %1254 = vmatprep.mubr.f32.mxu0 0.0
        %1255 = vmatmul.mubr.f32.gmra.mrb[0].mxu0 %v1177
        %v1256 = vpop.f32.mrb[0].mxu0
        %v1257 = vadd.f32 0.0, %v1256
        %v1258 = vpop.f32.mrb[0].mxu0
        %1259 = vmatprep.mubr.f32.mxu0 0.0
        %1260 = vmatmul.mubr.f32.gmra.mrb[0].mxu0 %v1180
        %v1261 = vpop.f32.mrb[0].mxu0
        %v1262 = vadd.f32 0.0, %v1261
        %v1263 = vpop.f32.mrb[0].mxu0
        %1264 = vmatprep.mubr.f32.mxu0 0.0
        %1265 = vmatmul.mubr.f32.gmra.mrb[0].mxu0 %v1183
        %v1266 = vpop.f32.mrb[0].mxu0
        %v1267 = vadd.f32 0.0, %v1266
        %v1268 = vpop.f32.mrb[0].mxu0
        %1269 = vdwg.mxu0
        %v1270 = vadd.f32 %v1133, %v1252
        %v1271 = vadd.f32 %v1134, %v1257
        %v1272 = vadd.f32 %v1135, %v1262
        %v1273 = vadd.f32 %v1136, %v1267
        %1274 = vst.msk [vmem:[#allocation2] sm:$0xff] %vm489, %v1270
        %1275 = vst.msk [vmem:[#allocation2 + $0x8] sm:$0xff] %vm489, %v1271
        %1276 = vst.msk [vmem:[#allocation2 + $0x10] sm:$0xff] %vm489, %v1272
        %1277 = vst.msk [vmem:[#allocation2 + $0x18] sm:$0xff] %vm489, %v1273
        %v1278 = vld [vmem:[#allocation3] sm:$0x1]
        %1279 = vset.pattern.permute.xlu0 0
        %1280 = vperm.xlu0 %1279, %v1106
        %v1281 = vpop.permute.xlu0 %1280
        %v1283 = vlaneseq
        %v1284 = vshrl.u32 %v1283, 7
        %v1285 = vsub.s32 0, %v1284
        %v1286 = vrot.slane %v1281, %v1285
        %v1287 = vmul.f32 %v1286, %v1278
        %vm1288 = vcmask 523520
        %v1289 = vsel %vm1288, %v1119, 0.0
        %v1290 = vrot.slane %v1289, 4
        %v1291 = vadd.f32 %v1289, %v1290
        %v1292 = vrot.slane %v1291, 2
        %v1293 = vadd.f32 %v1291, %v1292
        %v1294 = vrot.slane %v1293, 1
        %v1295 = vadd.f32 %v1293, %v1294
        %v1298 = vunpack.c.l.s4 1966171168
        %v1299 = vunpack.c.0.s8 %v1298
        %v1300 = vlaneseq
        %v1301 = vshrl.u32 %v1300, 7
        %v1302 = vsub.s32 %v1299, %v1301
        %v1303 = vrot.slane %v1295, %v1302
        %v1305 = vunpack.c.l.s4 1966171168
        %v1306 = vunpack.c.0.s8 %v1305
        %v1307 = vlaneseq
        %v1308 = vshrl.u32 %v1307, 7
        %v1309 = vsub.s32 %v1306, %v1308
        %v1310 = vrot.slane %v1303, %v1309
        %1311 = vrot.lane.b32.xlu0 %v1310, 96
        %v1312 = vpop.permute.xlu0 %1311
        %v1314 = vadd.f32 %v1287, %v1312
        %vm1315 = vcmask 253952
        %1316 = vst.msk [vmem:[#allocation3] sm:$0x1] %vm1315, %v1314
        %vm1317 = vcmask 7175
        %1318 = vst.msk [vmem:[#allocation4 - $0x7] sm:$0x80] %vm1317, %v1022
        %s1319 = sand.u32 %s233, 1
        %s1320 = scalar_lea.sflag [#allocation7], %s1319
        %s1321 = sand.u32 %s233, 1
        %s1322 = smul.addr %s1321, 8
        %s1323 = scalar_lea.vmem [#allocation19], %s1322
        // Predicated region
        $region89: #{tpu_custom_call.1} parent=51 // pred_check
          %p1324 = pneg %p243
        $region90: #{tpu_custom_call.1} parent=51 // pred_check_branch
          %1326 = sbr.rel (%p1324) target = $region92
        $region91: #{tpu_custom_call.1} parent=51 // pred_region
          %s1328 = ssub.s32 128, 128
          %1329 = vsyncadd %s1320, %s1328
          %s1330 = smul.addr %s35, 2
          %s1331 = sadd.s32 %s36, %s1330
          %s1332 = smul.addr %s1331, 128
          %s1333 = scalar_lea.hbm %s8, %s1332
          %s1335 = sshll.u32 %s1323, 4
          %s1336 = int_to_ptr.vmem [resolvable:$true] %s1335
          %1338 = dma.vmem_to_hbm [thread:$0]  %s1336, 128, %s1333, %s1320
        $region92: #{tpu_custom_call.1} parent=51 // pred_fallthru
          _
      $region52: #{tpu_custom_call.1} parent=5 // pred_fallthru
        _
      %p1339 = scmp.le.s32.totalorder 2, %s26
      // Predicated region
      $region93: #{tpu_custom_call.1} parent=5 // pred_check
        %p1340 = pneg %p1339
      $region94: #{tpu_custom_call.1} parent=5 // pred_check_branch
        %1342 = sbr.rel (%p1340) target = $region96
      $region95: #{tpu_custom_call.1} parent=5 // pred_region
        %s1343 = ssub.s32 %s26, 2
        // Predicated region
        $region97: #{tpu_custom_call.1} parent=95 // pred_check
          %p1344 = pneg %p249
        $region98: #{tpu_custom_call.1} parent=95 // pred_check_branch
          %1346 = sbr.rel (%p1344) target = $region100
        $region99: #{tpu_custom_call.1} parent=95 // pred_region
          %s1347 = sand.u32 %s234, 1
          %s1348 = scalar_lea.sflag [#allocation7], %s1347
          %s1349 = sand.u32 %s234, 1
          %s1350 = smul.addr %s1349, 8
          %s1351 = scalar_lea.vmem [#allocation19], %s1350
          %1352 = dma.done %s1348, 128
        $region100: #{tpu_custom_call.1} parent=95 // pred_fallthru
          _
      $region96: #{tpu_custom_call.1} parent=5 // pred_fallthru
        _
    $region6: #{tpu_custom_call.1} parent=1 // loop_footer
      %s30 = sadd.s32 1, %s26
    $region7: #{tpu_custom_call.1} parent=1 // loop_footer_branch
      %25 = sbr.rel target = $region3
    $region8: #{tpu_custom_call.1} parent=1 // loop_exit
      _
    %1353 = vsyncpa [#allocation6], 1
    %s1354 = scalar_lea.sflag [#allocation6], 1
    %1355 = vsyncpa %s1354, 1
    %1356 = vsyncpa [#allocation9], 1
    %s1357 = scalar_lea.sflag [#allocation9], 1
    %1358 = vsyncpa %s1357, 1
    %1359 = vsyncpa [#allocation12], 1
    %1360 = vsyncpa [#allocation15], 1
    %1361 = vsyncpa [#allocation18], 1
    %1362 = vsyncpa [#allocation7], 1
    %s1363 = scalar_lea.sflag [#allocation7], 1
    %1364 = vsyncpa %s1363, 1

</llo_original>
